<compile_context>
chip_gen: v6e
topology: v6e:2x2x1
jax: 0.10.0
libtpu: 0.0.40
codegen_flags: <defaults>
</compile_context>

<pallas_src>
import functools

import jax
import jax.numpy as jnp
from jax.experimental import pallas as pl
from jax.experimental.pallas import tpu as pltpu


def _block_bytes(hb, sq, sk, d, in_itemsize, out_itemsize):
    qkv = hb * (sq + 2 * sk) * d * in_itemsize
    mask = hb * sq * sk                      # int8 mask tile
    ctx = hb * sq * d * out_itemsize         # packed ctx tile
    prob = hb * sq * sk * 4                  # f32 prob tile
    return qkv + mask + ctx + prob


def _pick_head_block(bh, sq, sk, d, in_itemsize, out_itemsize,
                     max_heads=16, budget_bytes=4 << 20):
    """Largest divisor of B*H whose per-step working set fits the budget,
    preferring head counts that make the packed ctx tile a multiple of 128 lanes."""
    divisors = [h for h in range(1, bh + 1) if bh % h == 0]
    fits = [h for h in divisors
            if h <= max_heads
            and _block_bytes(h, sq, sk, d, in_itemsize, out_itemsize) <= budget_bytes]
    if not fits:
        return 1
    lane_dense = [h for h in fits if (h * d) % 128 == 0]
    return max(lane_dense) if lane_dense else max(fits)


def _sdpa_kernel(q_ref, k_ref, v_ref, mask_ref, ctx_ref, prob_ref, *,
                 scale, n_heads_blk):
    q = q_ref[...]                       # (Hb, Sq, D)  compute dtype
    k = k_ref[...]                       # (Hb, Sk, D)
    v = v_ref[...]                       # (Hb, Sk, D)
    m = mask_ref[...]                    # (Hb, Sq, Sk) int8, nonzero == masked

    # scores = Q @ K^T * scale -- contract both operands on the last dim so the
    # MXU consumes K directly (no XLU transpose of the K tile each step).
    scores = jnp.einsum("hqd,hkd->hqk", q, k, preferred_element_type=jnp.float32)
    scores = scores * scale
    scores = jnp.where(m != 0, jnp.float32(-1e9), scores)

    # Numerically stable softmax over the key axis (f32 throughout).
    mx = jnp.max(scores, axis=-1, keepdims=True)
    e = jnp.exp(scores - mx)
    denom = jnp.sum(e, axis=-1, keepdims=True)
    inv = pl.reciprocal(denom, approx=True)      # EUP slot (otherwise idle)
    inv = inv * (2.0 - denom * inv)              # one Newton step -> ~f32 exact
    p = e * inv

    prob_ref[...] = p.astype(prob_ref.dtype)

    # context = P @ V, packed lane-dense: head h of this block occupies columns
    # [h*D, (h+1)*D) of the (Sq, Hb*D) output tile -> full-width stores.
    pv = p.astype(v.dtype)
    ctx_heads = [
        jnp.dot(pv[h], v[h], preferred_element_type=jnp.float32)
        for h in range(n_heads_blk)
    ]
    ctx = ctx_heads[0] if n_heads_blk == 1 else jnp.concatenate(ctx_heads, axis=-1)
    ctx_ref[0] = ctx.astype(ctx_ref.dtype)


def scaled_dot_product_attention(Q, K, V, attn_mask, d_head, *,
                                 compute_dtype=None, block_heads=None):
    """Q, K, V: (B, H, S, D). attn_mask: (B, H, Sq, Sk), truthy == masked.

    Returns (context (B,H,Sq,D), attn_prob (B,H,Sq,Sk)), matching the PyTorch
    module's forward (dropout is identity in inference mode).
    compute_dtype: optionally jnp.bfloat16 for the matmul operands (v6e/v7x);
    softmax and accumulation stay in float32.
    """
    B, H, Sq, D = Q.shape
    Sk = K.shape[2]
    out_dtype = Q.dtype
    scale = 1.0 / float(d_head) ** 0.5

    if compute_dtype is not None:
        Q = Q.astype(compute_dtype)
        K = K.astype(compute_dtype)
        V = V.astype(compute_dtype)

    BH = B * H
    q = Q.reshape(BH, Sq, D)
    k = K.reshape(BH, Sk, D)
    v = V.reshape(BH, Sk, D)
    mask = attn_mask.reshape(BH, Sq, Sk).astype(jnp.int8)   # 4x less DMA than int32

    in_itemsize = jnp.dtype(q.dtype).itemsize
    out_itemsize = jnp.dtype(out_dtype).itemsize
    if block_heads is None:
        hb = _pick_head_block(BH, Sq, Sk, D, in_itemsize, out_itemsize)
    else:
        hb = block_heads
    assert BH % hb == 0, "block_heads must divide batch * n_head"
    G = BH // hb
    blk_bytes = _block_bytes(hb, Sq, Sk, D, in_itemsize, out_itemsize)

    kernel = functools.partial(_sdpa_kernel, scale=scale, n_heads_blk=hb)

    # Explicit scoped-VMEM limit (double-buffered blocks + headroom).
    vmem_limit = int(max(32 * 1024 * 1024, 2 * blk_bytes + (4 << 20)))

    cost = pl.CostEstimate(
        flops=4 * BH * Sq * Sk * D,              # QK^T + PV, 2 flops/MAC each
        transcendentals=BH * Sq * Sk,            # exp
        bytes_accessed=(q.nbytes + k.nbytes + v.nbytes + mask.nbytes
                        + BH * Sq * D * out_itemsize
                        + BH * Sq * Sk * 4),
    )

    ctx_packed, prob = pl.pallas_call(
        kernel,
        out_shape=(
            jax.ShapeDtypeStruct((G, Sq, hb * D), out_dtype),
            jax.ShapeDtypeStruct((BH, Sq, Sk), jnp.float32),
        ),
        grid_spec=pltpu.PrefetchScalarGridSpec(
            num_scalar_prefetch=0,
            grid=(G,),
            in_specs=[
                pl.BlockSpec((hb, Sq, D), lambda g: (g, 0, 0)),
                pl.BlockSpec((hb, Sk, D), lambda g: (g, 0, 0)),
                pl.BlockSpec((hb, Sk, D), lambda g: (g, 0, 0)),
                pl.BlockSpec((hb, Sq, Sk), lambda g: (g, 0, 0)),
            ],
            out_specs=[
                pl.BlockSpec((1, Sq, hb * D), lambda g: (g, 0, 0)),
                pl.BlockSpec((hb, Sq, Sk), lambda g: (g, 0, 0)),
            ],
        ),
        compiler_params=pltpu.CompilerParams(
            dimension_semantics=("parallel",),     # head-block axis: megacore/2-TC split
            vmem_limit_bytes=vmem_limit,
        ),
        cost_estimate=cost,
    )(q, k, v, mask)

    # Unpack the lane-dense ctx (G, Sq, hb*D) back to (B, H, Sq, D).
    context = (ctx_packed.reshape(G, Sq, hb, D)
               .transpose(0, 2, 1, 3)
               .reshape(B, H, Sq, D))
    attn_prob = prob.reshape(B, H, Sq, Sk)
    return context, attn_prob


def reference_sdpa(Q, K, V, attn_mask, d_head):
    scale = 1.0 / float(d_head) ** 0.5
    scores = jnp.einsum("bhqd,bhkd->bhqk", Q, K) * scale
    scores = jnp.where(attn_mask, -1e9, scores)
    p = jax.nn.softmax(scores, axis=-1)
    ctx = jnp.einsum("bhqk,bhkd->bhqd", p, V)
    return ctx, p


if __name__ == "__main__":
    # Small deterministic example: batch=2, heads=4, seq=8, d_head=32
    B, H, S, D = 2, 4, 8, 32
    key = jax.random.PRNGKey(0)
    kq, kk, kv, km = jax.random.split(key, 4)

    Q = jax.random.normal(kq, (B, H, S, D), dtype=jnp.float32)
    K = jax.random.normal(kk, (B, H, S, D), dtype=jnp.float32)
    V = jax.random.normal(kv, (B, H, S, D), dtype=jnp.float32)
    # Padding-style mask: last two key positions are masked for every query.
    key_pad = jnp.zeros((B, H, 1, S), dtype=jnp.bool_).at[..., S - 2:].set(True)
    attn_mask = jnp.broadcast_to(key_pad, (B, H, S, S))

    ref_ctx, ref_prob = reference_sdpa(Q, K, V, attn_mask, d_head=D)

    # f32 path (bit-faithful to the PyTorch module's numerics)
    ctx, prob = scaled_dot_product_attention(Q, K, V, attn_mask, d_head=D)
    jax.block_until_ready((ctx, prob))
    assert jnp.allclose(ctx, ref_ctx, atol=1e-5, rtol=1e-5), "context mismatch"
    assert jnp.allclose(prob, ref_prob, atol=1e-5, rtol=1e-5), "attn_prob mismatch"

    # bf16-operand path (v6e/v7x perf option): halves Q/K/V HBM bytes, bf16 MXU.
    ctx16, prob16 = scaled_dot_product_attention(
        Q, K, V, attn_mask, d_head=D, compute_dtype=jnp.bfloat16)
    jax.block_until_ready((ctx16, prob16))
    assert jnp.allclose(ctx16, ref_ctx, atol=5e-2, rtol=5e-2), "bf16 context mismatch"
    assert jnp.allclose(prob16, ref_prob, atol=5e-2, rtol=5e-2), "bf16 attn_prob mismatch"

    print("KERNEL_OK")
</pallas_src>

<mosaic_0001>
module attributes {stable_mosaic.version = 11 : i64} {
  func.func @_sdpa_kernel(%arg0: i32, %arg1: memref<8x8x32xf32, #tpu.memory_space<vmem>>, %arg2: memref<8x8x32xf32, #tpu.memory_space<vmem>>, %arg3: memref<8x8x32xf32, #tpu.memory_space<vmem>>, %arg4: memref<8x8x8xi8, #tpu.memory_space<vmem>>, %arg5: memref<1x8x256xf32, #tpu.memory_space<vmem>>, %arg6: memref<8x8x8xf32, #tpu.memory_space<vmem>>) attributes {dimension_semantics = [#tpu.dimension_semantics<parallel>], iteration_bounds = array<i64: 1>, scalar_prefetch = 0 : i64, scratch_operands = 0 : i64, tpu.core_type = #tpu.core_type<tc>, window_params = [{transform_indices = @transform_0, window_bounds = array<i64: 8, 8, 32>}, {transform_indices = @transform_1, window_bounds = array<i64: 8, 8, 32>}, {transform_indices = @transform_2, window_bounds = array<i64: 8, 8, 32>}, {transform_indices = @transform_3, window_bounds = array<i64: 8, 8, 8>}, {transform_indices = @transform_4, window_bounds = array<i64: 1, 8, 256>}, {transform_indices = @transform_5, window_bounds = array<i64: 8, 8, 8>}]} {
    %c0 = arith.constant 0 : index
    %c0_0 = arith.constant 0 : index
    %c0_1 = arith.constant 0 : index
    %0 = vector.load %arg1[%c0, %c0_0, %c0_1] : memref<8x8x32xf32, #tpu.memory_space<vmem>>, vector<8x8x32xf32>
    %c0_2 = arith.constant 0 : index
    %c0_3 = arith.constant 0 : index
    %c0_4 = arith.constant 0 : index
    %1 = vector.load %arg2[%c0_2, %c0_3, %c0_4] : memref<8x8x32xf32, #tpu.memory_space<vmem>>, vector<8x8x32xf32>
    %c0_5 = arith.constant 0 : index
    %c0_6 = arith.constant 0 : index
    %c0_7 = arith.constant 0 : index
    %2 = vector.load %arg3[%c0_5, %c0_6, %c0_7] : memref<8x8x32xf32, #tpu.memory_space<vmem>>, vector<8x8x32xf32>
    %c0_8 = arith.constant 0 : index
    %c0_9 = arith.constant 0 : index
    %c0_10 = arith.constant 0 : index
    %3 = vector.load %arg4[%c0_8, %c0_9, %c0_10] : memref<8x8x8xi8, #tpu.memory_space<vmem>>, vector<8x8x8xi8>
    "tpu.trace_start"() <{level = 10 : i32, message = "hqd,hkd->hqk"}> : () -> ()
    %cst = arith.constant dense<0.000000e+00> : vector<8x8x8xf32>
    %4 = tpu.matmul %0, %1, %cst {dimension_numbers = #tpu.dot_dimension_numbers<[2], [2], [1], [1], [0, 0, 0, 1, 1, 1], [0], [0]>} : vector<8x8x32xf32>, vector<8x8x32xf32>, vector<8x8x8xf32> -> vector<8x8x8xf32>
    "tpu.trace_stop"() : () -> ()
    %cst_11 = arith.constant 0.176776692 : f32
    %5 = vector.broadcast %cst_11 : f32 to vector<8x8x8xf32>
    %6 = arith.mulf %4, %5 : vector<8x8x8xf32>
    %c0_i8 = arith.constant 0 : i8
    %7 = vector.broadcast %c0_i8 : i8 to vector<8x8x8xi8>
    %8 = arith.cmpi ne, %3, %7 : vector<8x8x8xi8>
    %cst_12 = arith.constant -1.000000e+09 : f32
    %9 = vector.broadcast %cst_12 : f32 to vector<8x8x8xf32>
    %10 = arith.select %8, %9, %6 : vector<8x8x8xi1>, vector<8x8x8xf32>
    %cst_13 = arith.constant dense<0xFF800000> : vector<8x8xf32>
    %11 = vector.multi_reduction <maximumf>, %10, %cst_13 [2] : vector<8x8x8xf32> to vector<8x8xf32>
    %12 = vector.shape_cast %11 : vector<8x8xf32> to vector<8x8x1xf32>
    %13 = vector.broadcast %12 : vector<8x8x1xf32> to vector<8x8x8xf32>
    %14 = arith.subf %10, %13 : vector<8x8x8xf32>
    %15 = math.exp %14 : vector<8x8x8xf32>
    %cst_14 = arith.constant dense<0.000000e+00> : vector<8x8xf32>
    %16 = vector.multi_reduction <add>, %15, %cst_14 [2] : vector<8x8x8xf32> to vector<8x8xf32>
    %17 = vector.shape_cast %16 : vector<8x8xf32> to vector<8x8x1xf32>
    %18 = tpu.reciprocal %17 {approx = true} : vector<8x8x1xf32> -> vector<8x8x1xf32>
    %19 = arith.mulf %17, %18 : vector<8x8x1xf32>
    %cst_15 = arith.constant 2.000000e+00 : f32
    %20 = vector.broadcast %cst_15 : f32 to vector<8x8x1xf32>
    %21 = arith.subf %20, %19 : vector<8x8x1xf32>
    %22 = arith.mulf %18, %21 : vector<8x8x1xf32>
    %23 = vector.broadcast %22 : vector<8x8x1xf32> to vector<8x8x8xf32>
    %24 = arith.mulf %15, %23 : vector<8x8x8xf32>
    %c0_16 = arith.constant 0 : index
    %c0_17 = arith.constant 0 : index
    %c0_18 = arith.constant 0 : index
    %25 = vector.load %arg6[%c0_16, %c0_17, %c0_18] : memref<8x8x8xf32, #tpu.memory_space<vmem>>, vector<8x8x8xf32>
    tpu.vector_store %arg6[%c0_16, %c0_17, %c0_18], %24 {strides = array<i32>} : memref<8x8x8xf32, #tpu.memory_space<vmem>>, vector<8x8x8xf32>,
    %26 = vector.extract_strided_slice %24 {offsets = [0, 0, 0], sizes = [1, 8, 8], strides = [1, 1, 1]} : vector<8x8x8xf32> to vector<1x8x8xf32>
    %27 = vector.shape_cast %26 : vector<1x8x8xf32> to vector<8x8xf32>
    %28 = vector.extract_strided_slice %2 {offsets = [0, 0, 0], sizes = [1, 8, 32], strides = [1, 1, 1]} : vector<8x8x32xf32> to vector<1x8x32xf32>
    %29 = vector.shape_cast %28 : vector<1x8x32xf32> to vector<8x32xf32>
    %cst_19 = arith.constant dense<0.000000e+00> : vector<8x32xf32>
    %30 = tpu.matmul %27, %29, %cst_19 {dimension_numbers = #tpu.dot_dimension_numbers<[1], [0], [0], [1], [0, 0, 1, 1], [], []>} : vector<8x8xf32>, vector<8x32xf32>, vector<8x32xf32> -> vector<8x32xf32>
    %31 = vector.extract_strided_slice %24 {offsets = [1, 0, 0], sizes = [1, 8, 8], strides = [1, 1, 1]} : vector<8x8x8xf32> to vector<1x8x8xf32>
    %32 = vector.shape_cast %31 : vector<1x8x8xf32> to vector<8x8xf32>
    %33 = vector.extract_strided_slice %2 {offsets = [1, 0, 0], sizes = [1, 8, 32], strides = [1, 1, 1]} : vector<8x8x32xf32> to vector<1x8x32xf32>
    %34 = vector.shape_cast %33 : vector<1x8x32xf32> to vector<8x32xf32>
    %cst_20 = arith.constant dense<0.000000e+00> : vector<8x32xf32>
    %35 = tpu.matmul %32, %34, %cst_20 {dimension_numbers = #tpu.dot_dimension_numbers<[1], [0], [0], [1], [0, 0, 1, 1], [], []>} : vector<8x8xf32>, vector<8x32xf32>, vector<8x32xf32> -> vector<8x32xf32>
    %36 = vector.extract_strided_slice %24 {offsets = [2, 0, 0], sizes = [1, 8, 8], strides = [1, 1, 1]} : vector<8x8x8xf32> to vector<1x8x8xf32>
    %37 = vector.shape_cast %36 : vector<1x8x8xf32> to vector<8x8xf32>
    %38 = vector.extract_strided_slice %2 {offsets = [2, 0, 0], sizes = [1, 8, 32], strides = [1, 1, 1]} : vector<8x8x32xf32> to vector<1x8x32xf32>
    %39 = vector.shape_cast %38 : vector<1x8x32xf32> to vector<8x32xf32>
    %cst_21 = arith.constant dense<0.000000e+00> : vector<8x32xf32>
    %40 = tpu.matmul %37, %39, %cst_21 {dimension_numbers = #tpu.dot_dimension_numbers<[1], [0], [0], [1], [0, 0, 1, 1], [], []>} : vector<8x8xf32>, vector<8x32xf32>, vector<8x32xf32> -> vector<8x32xf32>
    %41 = vector.extract_strided_slice %24 {offsets = [3, 0, 0], sizes = [1, 8, 8], strides = [1, 1, 1]} : vector<8x8x8xf32> to vector<1x8x8xf32>
    %42 = vector.shape_cast %41 : vector<1x8x8xf32> to vector<8x8xf32>
    %43 = vector.extract_strided_slice %2 {offsets = [3, 0, 0], sizes = [1, 8, 32], strides = [1, 1, 1]} : vector<8x8x32xf32> to vector<1x8x32xf32>
    %44 = vector.shape_cast %43 : vector<1x8x32xf32> to vector<8x32xf32>
    %cst_22 = arith.constant dense<0.000000e+00> : vector<8x32xf32>
    %45 = tpu.matmul %42, %44, %cst_22 {dimension_numbers = #tpu.dot_dimension_numbers<[1], [0], [0], [1], [0, 0, 1, 1], [], []>} : vector<8x8xf32>, vector<8x32xf32>, vector<8x32xf32> -> vector<8x32xf32>
    %46 = vector.extract_strided_slice %24 {offsets = [4, 0, 0], sizes = [1, 8, 8], strides = [1, 1, 1]} : vector<8x8x8xf32> to vector<1x8x8xf32>
    %47 = vector.shape_cast %46 : vector<1x8x8xf32> to vector<8x8xf32>
    %48 = vector.extract_strided_slice %2 {offsets = [4, 0, 0], sizes = [1, 8, 32], strides = [1, 1, 1]} : vector<8x8x32xf32> to vector<1x8x32xf32>
    %49 = vector.shape_cast %48 : vector<1x8x32xf32> to vector<8x32xf32>
    %cst_23 = arith.constant dense<0.000000e+00> : vector<8x32xf32>
    %50 = tpu.matmul %47, %49, %cst_23 {dimension_numbers = #tpu.dot_dimension_numbers<[1], [0], [0], [1], [0, 0, 1, 1], [], []>} : vector<8x8xf32>, vector<8x32xf32>, vector<8x32xf32> -> vector<8x32xf32>
    %51 = vector.extract_strided_slice %24 {offsets = [5, 0, 0], sizes = [1, 8, 8], strides = [1, 1, 1]} : vector<8x8x8xf32> to vector<1x8x8xf32>
    %52 = vector.shape_cast %51 : vector<1x8x8xf32> to vector<8x8xf32>
    %53 = vector.extract_strided_slice %2 {offsets = [5, 0, 0], sizes = [1, 8, 32], strides = [1, 1, 1]} : vector<8x8x32xf32> to vector<1x8x32xf32>
    %54 = vector.shape_cast %53 : vector<1x8x32xf32> to vector<8x32xf32>
    %cst_24 = arith.constant dense<0.000000e+00> : vector<8x32xf32>
    %55 = tpu.matmul %52, %54, %cst_24 {dimension_numbers = #tpu.dot_dimension_numbers<[1], [0], [0], [1], [0, 0, 1, 1], [], []>} : vector<8x8xf32>, vector<8x32xf32>, vector<8x32xf32> -> vector<8x32xf32>
    %56 = vector.extract_strided_slice %24 {offsets = [6, 0, 0], sizes = [1, 8, 8], strides = [1, 1, 1]} : vector<8x8x8xf32> to vector<1x8x8xf32>
    %57 = vector.shape_cast %56 : vector<1x8x8xf32> to vector<8x8xf32>
    %58 = vector.extract_strided_slice %2 {offsets = [6, 0, 0], sizes = [1, 8, 32], strides = [1, 1, 1]} : vector<8x8x32xf32> to vector<1x8x32xf32>
    %59 = vector.shape_cast %58 : vector<1x8x32xf32> to vector<8x32xf32>
    %cst_25 = arith.constant dense<0.000000e+00> : vector<8x32xf32>
    %60 = tpu.matmul %57, %59, %cst_25 {dimension_numbers = #tpu.dot_dimension_numbers<[1], [0], [0], [1], [0, 0, 1, 1], [], []>} : vector<8x8xf32>, vector<8x32xf32>, vector<8x32xf32> -> vector<8x32xf32>
    %61 = vector.extract_strided_slice %24 {offsets = [7, 0, 0], sizes = [1, 8, 8], strides = [1, 1, 1]} : vector<8x8x8xf32> to vector<1x8x8xf32>
    %62 = vector.shape_cast %61 : vector<1x8x8xf32> to vector<8x8xf32>
    %63 = vector.extract_strided_slice %2 {offsets = [7, 0, 0], sizes = [1, 8, 32], strides = [1, 1, 1]} : vector<8x8x32xf32> to vector<1x8x32xf32>
    %64 = vector.shape_cast %63 : vector<1x8x32xf32> to vector<8x32xf32>
    %cst_26 = arith.constant dense<0.000000e+00> : vector<8x32xf32>
    %65 = tpu.matmul %62, %64, %cst_26 {dimension_numbers = #tpu.dot_dimension_numbers<[1], [0], [0], [1], [0, 0, 1, 1], [], []>} : vector<8x8xf32>, vector<8x32xf32>, vector<8x32xf32> -> vector<8x32xf32>
    %66 = tpu.concatenate %30, %35, %40, %45, %50, %55, %60, %65 in 1 : vector<8x32xf32>, vector<8x32xf32>, vector<8x32xf32>, vector<8x32xf32>, vector<8x32xf32>, vector<8x32xf32>, vector<8x32xf32>, vector<8x32xf32> -> vector<8x256xf32>
    %c0_27 = arith.constant 0 : index
    %c0_28 = arith.constant 0 : index
    %c0_29 = arith.constant 0 : index
    %67 = vector.load %arg5[%c0_27, %c0_28, %c0_29] : memref<1x8x256xf32, #tpu.memory_space<vmem>>, vector<1x8x256xf32>
    %68 = vector.shape_cast %67 : vector<1x8x256xf32> to vector<8x256xf32>
    %69 = vector.shape_cast %66 : vector<8x256xf32> to vector<1x8x256xf32>
    tpu.vector_store %arg5[%c0_27, %c0_28, %c0_29], %69 {strides = array<i32>} : memref<1x8x256xf32, #tpu.memory_space<vmem>>, vector<1x8x256xf32>,
    return
  }
  func.func @transform_0(%arg0: i32) -> (i32, i32, i32) {
    %c0_i32 = arith.constant 0 : i32
    %c0_i32_0 = arith.constant 0 : i32
    %c0_i32_1 = arith.constant 0 : i32
    return %arg0, %c0_i32, %c0_i32_0 : i32, i32, i32
  }
  func.func @transform_1(%arg0: i32) -> (i32, i32, i32) {
    %c0_i32 = arith.constant 0 : i32
    %c0_i32_0 = arith.constant 0 : i32
    %c0_i32_1 = arith.constant 0 : i32
    return %arg0, %c0_i32, %c0_i32_0 : i32, i32, i32
  }
  func.func @transform_2(%arg0: i32) -> (i32, i32, i32) {
    %c0_i32 = arith.constant 0 : i32
    %c0_i32_0 = arith.constant 0 : i32
    %c0_i32_1 = arith.constant 0 : i32
    return %arg0, %c0_i32, %c0_i32_0 : i32, i32, i32
  }
  func.func @transform_3(%arg0: i32) -> (i32, i32, i32) {
    %c0_i32 = arith.constant 0 : i32
    %c0_i32_0 = arith.constant 0 : i32
    %c0_i32_1 = arith.constant 0 : i32
    return %arg0, %c0_i32, %c0_i32_0 : i32, i32, i32
  }
  func.func @transform_4(%arg0: i32) -> (i32, i32, i32) {
    %c0_i32 = arith.constant 0 : i32
    %c0_i32_0 = arith.constant 0 : i32
    %c0_i32_1 = arith.constant 0 : i32
    return %arg0, %c0_i32, %c0_i32_0 : i32, i32, i32
  }
  func.func @transform_5(%arg0: i32) -> (i32, i32, i32) {
    %c0_i32 = arith.constant 0 : i32
    %c0_i32_0 = arith.constant 0 : i32
    %c0_i32_1 = arith.constant 0 : i32
    return %arg0, %c0_i32, %c0_i32_0 : i32, i32, i32
  }
}

</mosaic_0001>

<llo_original>
// kernel: tpu_custom_call.1
$region0: #{tpu_custom_call.1}
  #allocation0 [shape = 'u32[]', space=smem, size = 0x4, offset = 0x4, fixed_abs, tag = 'smem constant byte address 0x4 - core index']
  #allocation1 [shape = 'u32[144,128]{1,0:T(1,128)}', space=vmem, size = 0x12000, scoped, tag = 'internal scratch']
  %s0 = inlined_call_operand.hbm [shape: f32[8,8,32], index: 0, kind: input, shape index: {}]
  %s1 = inlined_call_operand.hbm [shape: f32[8,8,32], index: 1, kind: input, shape index: {}]
  %s2 = inlined_call_operand.hbm [shape: f32[8,8,32], index: 2, kind: input, shape index: {}]
  %s3 = inlined_call_operand.hbm [shape: s8[8,8,8], index: 3, kind: input, shape index: {}]
  %s4 = inlined_call_operand.hbm [shape: f32[1,8,256], index: 4, kind: output, shape index: {0}]
  %s5 = inlined_call_operand.hbm [shape: f32[8,8,8], index: 5, kind: output, shape index: {1}]
  %6 = xla_tuple %s4, %s5
  %s7 = sld [smem:[#allocation0]]
  $region50: #{tpu_custom_call.1} parent=0
    _
  %s9 = ssub.s32 1, %s7
  %s10 = scalar_select 0, %s9, %s7
  $region1: #{tpu_custom_call.1} parent=0
    #allocation2 [shape = 'u8[32768]{0}', space=vmem, size = 0x8000, scoped, tag = 'input window, operand 0, single buffered']
    #allocation3 [shape = 's32[1]{0}', space=sflag, size = 0x4, scoped, tag = 'scoped memory for tpu_custom_call.1']
    #allocation4 [shape = 's32[1]{0}', space=sflag, size = 0x4, scoped, tag = 'scoped memory for tpu_custom_call.1']
    #allocation5 [shape = 'u8[32768]{0}', space=vmem, size = 0x8000, scoped, tag = 'input window, operand 1, single buffered']
    #allocation6 [shape = 's32[1]{0}', space=sflag, size = 0x4, scoped, tag = 'scoped memory for tpu_custom_call.1']
    #allocation7 [shape = 'u8[32768]{0}', space=vmem, size = 0x8000, scoped, tag = 'input window, operand 2, single buffered']
    #allocation8 [shape = 'u8[8192]{0}', space=vmem, size = 0x2000, scoped, tag = 'input window, operand 3, single buffered']
    #allocation9 [shape = 's32[1]{0}', space=sflag, size = 0x4, scoped, tag = 'scoped memory for tpu_custom_call.1']
    #allocation10 [shape = 'u8[8192]{0}', space=vmem, size = 0x2000, scoped, tag = 'output window, operand 0, single buffered']
    #allocation11 [shape = 'u8[32768]{0}', space=vmem, size = 0x8000, scoped, tag = 'output window, operand 1, single buffered']
    #allocation12 [shape = 's32[1]{0}', space=sflag, size = 0x4, scoped, tag = 'scoped memory for tpu_custom_call.1']
    %11 = vsyncpa [#allocation3], 0
    %12 = vsyncpa [#allocation6], 0
    %13 = vsyncpa [#allocation9], 0
    %14 = vsyncpa [#allocation4], 0
    %15 = vsyncpa [#allocation12], 0
    // Predicated region
    $region2: #{tpu_custom_call.1} parent=1 // pred_check
      _
    $region3: #{tpu_custom_call.1} parent=1 // pred_check_branch
      %17 = sbr.rel (0) target = $region5
    $region4: #{tpu_custom_call.1} parent=1 // pred_region
      %s19 = ssub.s32 1024, 1024
      %20 = vsyncadd [#allocation3], %s19
      %s21 = sshll.u32 [#allocation2], 4
      %s22 = int_to_ptr.vmem [resolvable:$true] %s21
      %27 = dma.hbm_to_vmem [thread:$0]  %s0, 1024, %s22, [#allocation3], 128, 128, 8
    $region5: #{tpu_custom_call.1} parent=1 // pred_fallthru
      _
    // Predicated region
    $region6: #{tpu_custom_call.1} parent=1 // pred_check
      _
    $region7: #{tpu_custom_call.1} parent=1 // pred_check_branch
      %29 = sbr.rel (0) target = $region9
    $region8: #{tpu_custom_call.1} parent=1 // pred_region
      %s31 = ssub.s32 1024, 1024
      %32 = vsyncadd [#allocation6], %s31
      %s33 = sshll.u32 [#allocation5], 4
      %s34 = int_to_ptr.vmem [resolvable:$true] %s33
      %39 = dma.hbm_to_vmem [thread:$0]  %s1, 1024, %s34, [#allocation6], 128, 128, 8
    $region9: #{tpu_custom_call.1} parent=1 // pred_fallthru
      _
    // Predicated region
    $region10: #{tpu_custom_call.1} parent=1 // pred_check
      _
    $region11: #{tpu_custom_call.1} parent=1 // pred_check_branch
      %41 = sbr.rel (0) target = $region13
    $region12: #{tpu_custom_call.1} parent=1 // pred_region
      %s43 = ssub.s32 1024, 1024
      %44 = vsyncadd [#allocation6], %s43
      %s45 = sshll.u32 [#allocation7], 4
      %s46 = int_to_ptr.vmem [resolvable:$true] %s45
      %51 = dma.hbm_to_vmem [thread:$0]  %s2, 1024, %s46, [#allocation6], 128, 128, 8
    $region13: #{tpu_custom_call.1} parent=1 // pred_fallthru
      _
    // Predicated region
    $region14: #{tpu_custom_call.1} parent=1 // pred_check
      _
    $region15: #{tpu_custom_call.1} parent=1 // pred_check_branch
      %53 = sbr.rel (0) target = $region17
    $region16: #{tpu_custom_call.1} parent=1 // pred_region
      %s55 = ssub.s32 256, 256
      %56 = vsyncadd [#allocation9], %s55
      %s57 = sshll.u32 [#allocation8], 4
      %s58 = int_to_ptr.vmem [resolvable:$true] %s57
      %63 = dma.hbm_to_vmem [thread:$0]  %s3, 256, %s58, [#allocation9], 32, 32, 2
    $region17: #{tpu_custom_call.1} parent=1 // pred_fallthru
      _
    // Predicated region
    $region18: #{tpu_custom_call.1} parent=1 // pred_check
      _
    $region19: #{tpu_custom_call.1} parent=1 // pred_check_branch
      %65 = sbr.rel (0) target = $region21
    $region20: #{tpu_custom_call.1} parent=1 // pred_region
      %66 = dma.done [#allocation3], 1024
    $region21: #{tpu_custom_call.1} parent=1 // pred_fallthru
      _
    // Predicated region
    $region22: #{tpu_custom_call.1} parent=1 // pred_check
      _
    $region23: #{tpu_custom_call.1} parent=1 // pred_check_branch
      %68 = sbr.rel (0) target = $region25
    $region24: #{tpu_custom_call.1} parent=1 // pred_region
      %69 = dma.done [#allocation6], 1024
    $region25: #{tpu_custom_call.1} parent=1 // pred_fallthru
      _
    // Predicated region
    $region26: #{tpu_custom_call.1} parent=1 // pred_check
      _
    $region27: #{tpu_custom_call.1} parent=1 // pred_check_branch
      %71 = sbr.rel (0) target = $region29
    $region28: #{tpu_custom_call.1} parent=1 // pred_region
      %72 = dma.done [#allocation6], 1024
    $region29: #{tpu_custom_call.1} parent=1 // pred_fallthru
      _
    // Predicated region
    $region30: #{tpu_custom_call.1} parent=1 // pred_check
      _
    $region31: #{tpu_custom_call.1} parent=1 // pred_check_branch
      %74 = sbr.rel (0) target = $region33
    $region32: #{tpu_custom_call.1} parent=1 // pred_region
      %75 = dma.done [#allocation9], 256
    $region33: #{tpu_custom_call.1} parent=1 // pred_fallthru
      _
    %v78 = vld [vmem:[#allocation2] sm:$0xff]
    %v79 = vld [vmem:[#allocation2 + $0x8] sm:$0xff]
    %v80 = vld [vmem:[#allocation2 + $0x10] sm:$0xff]
    %v81 = vld [vmem:[#allocation2 + $0x18] sm:$0xff]
    %v82 = vld [vmem:[#allocation2 + $0x20] sm:$0xff]
    %v83 = vld [vmem:[#allocation2 + $0x28] sm:$0xff]
    %v84 = vld [vmem:[#allocation2 + $0x30] sm:$0xff]
    %v85 = vld [vmem:[#allocation2 + $0x38] sm:$0xff]
    %v86 = vld [vmem:[#allocation5] sm:$0xff]
    %v87 = vld [vmem:[#allocation5 + $0x8] sm:$0xff]
    %v88 = vld [vmem:[#allocation5 + $0x10] sm:$0xff]
    %v89 = vld [vmem:[#allocation5 + $0x18] sm:$0xff]
    %v90 = vld [vmem:[#allocation5 + $0x20] sm:$0xff]
    %v91 = vld [vmem:[#allocation5 + $0x28] sm:$0xff]
    %v92 = vld [vmem:[#allocation5 + $0x30] sm:$0xff]
    %v93 = vld [vmem:[#allocation5 + $0x38] sm:$0xff]
    %v94 = vld [vmem:[#allocation7] sm:$0xff]
    %v95 = vld [vmem:[#allocation7 + $0x8] sm:$0xff]
    %v96 = vld [vmem:[#allocation7 + $0x10] sm:$0xff]
    %v97 = vld [vmem:[#allocation7 + $0x18] sm:$0xff]
    %v98 = vld [vmem:[#allocation7 + $0x20] sm:$0xff]
    %v99 = vld [vmem:[#allocation7 + $0x28] sm:$0xff]
    %v100 = vld [vmem:[#allocation7 + $0x30] sm:$0xff]
    %v101 = vld [vmem:[#allocation7 + $0x38] sm:$0xff]
    %v102 = vld [vmem:[#allocation8] sm:$0x3]
    %v103 = vld [vmem:[#allocation8 + $0x2] sm:$0x3]
    %v104 = vld [vmem:[#allocation8 + $0x4] sm:$0x3]
    %v105 = vld [vmem:[#allocation8 + $0x6] sm:$0x3]
    %v106 = vld [vmem:[#allocation8 + $0x8] sm:$0x3]
    %v107 = vld [vmem:[#allocation8 + $0xa] sm:$0x3]
    %v108 = vld [vmem:[#allocation8 + $0xc] sm:$0x3]
    %v109 = vld [vmem:[#allocation8 + $0xe] sm:$0x3]
    %vm110 = vcmask 261120
    %v112 = vsel %vm110, %v78, 0
    %v115 = vsel %vm110, %v86, 0
    %117 = vmatprep.subr.mxu0 0.0
    %118 = vmatpush1.xpose.msra.mxu0 0.0
    %119 = vmatprep.subr.mxu0 0.0
    %120 = vmatpush1.xpose.msra.mxu0 0.0
    %121 = vmatprep.subr.mxu0 0.0
    %122 = vmatpush1.xpose.msra.mxu0 0.0
    %123 = vmatprep.subr.mxu0 0.0
    %124 = vmatpush1.xpose.msra.mxu0 0.0
    %125 = vmatprep.subr.mxu0 0.0
    %126 = vmatpush1.xpose.msra.mxu0 0.0
    %127 = vmatprep.subr.mxu0 0.0
    %128 = vmatpush1.xpose.msra.mxu0 0.0
    %129 = vmatprep.subr.mxu0 0.0
    %130 = vmatpush1.xpose.msra.mxu0 0.0
    %131 = vmatprep.subr.mxu0 0.0
    %132 = vmatpush1.xpose.msra.mxu0 0.0
    %133 = vmatprep.subr.mxu0 0.0
    %134 = vmatpush1.xpose.msra.mxu0 0.0
    %135 = vmatprep.subr.mxu0 0.0
    %136 = vmatpush1.xpose.msra.mxu0 0.0
    %137 = vmatprep.subr.mxu0 0.0
    %138 = vmatpush1.xpose.msra.mxu0 0.0
    %139 = vmatprep.subr.mxu0 0.0
    %140 = vmatpush1.xpose.msra.mxu0 0.0
    %141 = vmatprep.subr.mxu0 0.0
    %142 = vmatpush1.xpose.msra.mxu0 0.0
    %143 = vmatprep.subr.mxu0 0.0
    %144 = vmatpush1.xpose.msra.mxu0 0.0
    %145 = vmatprep.subr.mxu0 0.0
    %146 = vmatpush1.xpose.msra.mxu0 0.0
    %147 = vmatprep.subr.mxu0 0.0
    %148 = vmatpush1.xpose.msra.mxu0 %v115
    %149 = vmatprep.subr.mxu0 0.0
    %150 = vmatpush2.xpose.msra.mxu0 0.0
    %151 = vmatprep.subr.mxu0 0.0
    %152 = vmatpush2.xpose.msra.mxu0 0.0
    %153 = vmatprep.subr.mxu0 0.0
    %154 = vmatpush2.xpose.msra.mxu0 0.0
    %155 = vmatprep.subr.mxu0 0.0
    %156 = vmatpush2.xpose.msra.mxu0 0.0
    %157 = vmatprep.subr.mxu0 0.0
    %158 = vmatpush2.xpose.msra.mxu0 0.0
    %159 = vmatprep.subr.mxu0 0.0
    %160 = vmatpush2.xpose.msra.mxu0 0.0
    %161 = vmatprep.subr.mxu0 0.0
    %162 = vmatpush2.xpose.msra.mxu0 0.0
    %163 = vmatprep.subr.mxu0 0.0
    %164 = vmatpush2.xpose.msra.mxu0 0.0
    %165 = vmatprep.subr.mxu0 0.0
    %166 = vmatpush2.xpose.msra.mxu0 0.0
    %167 = vmatprep.subr.mxu0 0.0
    %168 = vmatpush2.xpose.msra.mxu0 0.0
    %169 = vmatprep.subr.mxu0 0.0
    %170 = vmatpush2.xpose.msra.mxu0 0.0
    %171 = vmatprep.subr.mxu0 0.0
    %172 = vmatpush2.xpose.msra.mxu0 0.0
    %173 = vmatprep.subr.mxu0 0.0
    %174 = vmatpush2.xpose.msra.mxu0 0.0
    %175 = vmatprep.subr.mxu0 0.0
    %176 = vmatpush2.xpose.msra.mxu0 0.0
    %177 = vmatprep.subr.mxu0 0.0
    %178 = vmatpush2.xpose.msra.mxu0 0.0
    %179 = vmatprep.subr.mxu0 0.0
    %180 = vmatpush2.xpose.msra.mxu0 0.0
    %181 = vmatprep.mubr.f32.mxu0 0.0
    %182 = vmatmul.mubr.f32.gmra.mxu0 %v112
    %v183 = vpop.f32.mrf.mxu0
    %v184 = vadd.f32 0.0, %v183
    %v185 = vpop.f32.mrf.mxu0
    %186 = vdwg.mxu0
    %v188 = vsel %vm110, %v79, 0
    %v191 = vsel %vm110, %v87, 0
    %193 = vmatprep.subr.mxu0 0.0
    %194 = vmatpush1.xpose.msra.mxu0 0.0
    %195 = vmatprep.subr.mxu0 0.0
    %196 = vmatpush1.xpose.msra.mxu0 0.0
    %197 = vmatprep.subr.mxu0 0.0
    %198 = vmatpush1.xpose.msra.mxu0 0.0
    %199 = vmatprep.subr.mxu0 0.0
    %200 = vmatpush1.xpose.msra.mxu0 0.0
    %201 = vmatprep.subr.mxu0 0.0
    %202 = vmatpush1.xpose.msra.mxu0 0.0
    %203 = vmatprep.subr.mxu0 0.0
    %204 = vmatpush1.xpose.msra.mxu0 0.0
    %205 = vmatprep.subr.mxu0 0.0
    %206 = vmatpush1.xpose.msra.mxu0 0.0
    %207 = vmatprep.subr.mxu0 0.0
    %208 = vmatpush1.xpose.msra.mxu0 0.0
    %209 = vmatprep.subr.mxu0 0.0
    %210 = vmatpush1.xpose.msra.mxu0 0.0
    %211 = vmatprep.subr.mxu0 0.0
    %212 = vmatpush1.xpose.msra.mxu0 0.0
    %213 = vmatprep.subr.mxu0 0.0
    %214 = vmatpush1.xpose.msra.mxu0 0.0
    %215 = vmatprep.subr.mxu0 0.0
    %216 = vmatpush1.xpose.msra.mxu0 0.0
    %217 = vmatprep.subr.mxu0 0.0
    %218 = vmatpush1.xpose.msra.mxu0 0.0
    %219 = vmatprep.subr.mxu0 0.0
    %220 = vmatpush1.xpose.msra.mxu0 0.0
    %221 = vmatprep.subr.mxu0 0.0
    %222 = vmatpush1.xpose.msra.mxu0 0.0
    %223 = vmatprep.subr.mxu0 0.0
    %224 = vmatpush1.xpose.msra.mxu0 %v191
    %225 = vmatprep.subr.mxu0 0.0
    %226 = vmatpush2.xpose.msra.mxu0 0.0
    %227 = vmatprep.subr.mxu0 0.0
    %228 = vmatpush2.xpose.msra.mxu0 0.0
    %229 = vmatprep.subr.mxu0 0.0
    %230 = vmatpush2.xpose.msra.mxu0 0.0
    %231 = vmatprep.subr.mxu0 0.0
    %232 = vmatpush2.xpose.msra.mxu0 0.0
    %233 = vmatprep.subr.mxu0 0.0
    %234 = vmatpush2.xpose.msra.mxu0 0.0
    %235 = vmatprep.subr.mxu0 0.0
    %236 = vmatpush2.xpose.msra.mxu0 0.0
    %237 = vmatprep.subr.mxu0 0.0
    %238 = vmatpush2.xpose.msra.mxu0 0.0
    %239 = vmatprep.subr.mxu0 0.0
    %240 = vmatpush2.xpose.msra.mxu0 0.0
    %241 = vmatprep.subr.mxu0 0.0
    %242 = vmatpush2.xpose.msra.mxu0 0.0
    %243 = vmatprep.subr.mxu0 0.0
    %244 = vmatpush2.xpose.msra.mxu0 0.0
    %245 = vmatprep.subr.mxu0 0.0
    %246 = vmatpush2.xpose.msra.mxu0 0.0
    %247 = vmatprep.subr.mxu0 0.0
    %248 = vmatpush2.xpose.msra.mxu0 0.0
    %249 = vmatprep.subr.mxu0 0.0
    %250 = vmatpush2.xpose.msra.mxu0 0.0
    %251 = vmatprep.subr.mxu0 0.0
    %252 = vmatpush2.xpose.msra.mxu0 0.0
    %253 = vmatprep.subr.mxu0 0.0
    %254 = vmatpush2.xpose.msra.mxu0 0.0
    %255 = vmatprep.subr.mxu0 0.0
    %256 = vmatpush2.xpose.msra.mxu0 0.0
    %257 = vmatprep.mubr.f32.mxu0 0.0
    %258 = vmatmul.mubr.f32.gmra.mxu0 %v188
    %v259 = vpop.f32.mrf.mxu0
    %v260 = vadd.f32 0.0, %v259
    %v261 = vpop.f32.mrf.mxu0
    %262 = vdwg.mxu0
    %v264 = vsel %vm110, %v80, 0
    %v267 = vsel %vm110, %v88, 0
    %269 = vmatprep.subr.mxu0 0.0
    %270 = vmatpush1.xpose.msra.mxu0 0.0
    %271 = vmatprep.subr.mxu0 0.0
    %272 = vmatpush1.xpose.msra.mxu0 0.0
    %273 = vmatprep.subr.mxu0 0.0
    %274 = vmatpush1.xpose.msra.mxu0 0.0
    %275 = vmatprep.subr.mxu0 0.0
    %276 = vmatpush1.xpose.msra.mxu0 0.0
    %277 = vmatprep.subr.mxu0 0.0
    %278 = vmatpush1.xpose.msra.mxu0 0.0
    %279 = vmatprep.subr.mxu0 0.0
    %280 = vmatpush1.xpose.msra.mxu0 0.0
    %281 = vmatprep.subr.mxu0 0.0
    %282 = vmatpush1.xpose.msra.mxu0 0.0
    %283 = vmatprep.subr.mxu0 0.0
    %284 = vmatpush1.xpose.msra.mxu0 0.0
    %285 = vmatprep.subr.mxu0 0.0
    %286 = vmatpush1.xpose.msra.mxu0 0.0
    %287 = vmatprep.subr.mxu0 0.0
    %288 = vmatpush1.xpose.msra.mxu0 0.0
    %289 = vmatprep.subr.mxu0 0.0
    %290 = vmatpush1.xpose.msra.mxu0 0.0
    %291 = vmatprep.subr.mxu0 0.0
    %292 = vmatpush1.xpose.msra.mxu0 0.0
    %293 = vmatprep.subr.mxu0 0.0
    %294 = vmatpush1.xpose.msra.mxu0 0.0
    %295 = vmatprep.subr.mxu0 0.0
    %296 = vmatpush1.xpose.msra.mxu0 0.0
    %297 = vmatprep.subr.mxu0 0.0
    %298 = vmatpush1.xpose.msra.mxu0 0.0
    %299 = vmatprep.subr.mxu0 0.0
    %300 = vmatpush1.xpose.msra.mxu0 %v267
    %301 = vmatprep.subr.mxu0 0.0
    %302 = vmatpush2.xpose.msra.mxu0 0.0
    %303 = vmatprep.subr.mxu0 0.0
    %304 = vmatpush2.xpose.msra.mxu0 0.0
    %305 = vmatprep.subr.mxu0 0.0
    %306 = vmatpush2.xpose.msra.mxu0 0.0
    %307 = vmatprep.subr.mxu0 0.0
    %308 = vmatpush2.xpose.msra.mxu0 0.0
    %309 = vmatprep.subr.mxu0 0.0
    %310 = vmatpush2.xpose.msra.mxu0 0.0
    %311 = vmatprep.subr.mxu0 0.0
    %312 = vmatpush2.xpose.msra.mxu0 0.0
    %313 = vmatprep.subr.mxu0 0.0
    %314 = vmatpush2.xpose.msra.mxu0 0.0
    %315 = vmatprep.subr.mxu0 0.0
    %316 = vmatpush2.xpose.msra.mxu0 0.0
    %317 = vmatprep.subr.mxu0 0.0
    %318 = vmatpush2.xpose.msra.mxu0 0.0
    %319 = vmatprep.subr.mxu0 0.0
    %320 = vmatpush2.xpose.msra.mxu0 0.0
    %321 = vmatprep.subr.mxu0 0.0
    %322 = vmatpush2.xpose.msra.mxu0 0.0
    %323 = vmatprep.subr.mxu0 0.0
    %324 = vmatpush2.xpose.msra.mxu0 0.0
    %325 = vmatprep.subr.mxu0 0.0
    %326 = vmatpush2.xpose.msra.mxu0 0.0
    %327 = vmatprep.subr.mxu0 0.0
    %328 = vmatpush2.xpose.msra.mxu0 0.0
    %329 = vmatprep.subr.mxu0 0.0
    %330 = vmatpush2.xpose.msra.mxu0 0.0
    %331 = vmatprep.subr.mxu0 0.0
    %332 = vmatpush2.xpose.msra.mxu0 0.0
    %333 = vmatprep.mubr.f32.mxu0 0.0
    %334 = vmatmul.mubr.f32.gmra.mxu0 %v264
    %v335 = vpop.f32.mrf.mxu0
    %v336 = vadd.f32 0.0, %v335
    %v337 = vpop.f32.mrf.mxu0
    %338 = vdwg.mxu0
    %v340 = vsel %vm110, %v81, 0
    %v343 = vsel %vm110, %v89, 0
    %345 = vmatprep.subr.mxu0 0.0
    %346 = vmatpush1.xpose.msra.mxu0 0.0
    %347 = vmatprep.subr.mxu0 0.0
    %348 = vmatpush1.xpose.msra.mxu0 0.0
    %349 = vmatprep.subr.mxu0 0.0
    %350 = vmatpush1.xpose.msra.mxu0 0.0
    %351 = vmatprep.subr.mxu0 0.0
    %352 = vmatpush1.xpose.msra.mxu0 0.0
    %353 = vmatprep.subr.mxu0 0.0
    %354 = vmatpush1.xpose.msra.mxu0 0.0
    %355 = vmatprep.subr.mxu0 0.0
    %356 = vmatpush1.xpose.msra.mxu0 0.0
    %357 = vmatprep.subr.mxu0 0.0
    %358 = vmatpush1.xpose.msra.mxu0 0.0
    %359 = vmatprep.subr.mxu0 0.0
    %360 = vmatpush1.xpose.msra.mxu0 0.0
    %361 = vmatprep.subr.mxu0 0.0
    %362 = vmatpush1.xpose.msra.mxu0 0.0
    %363 = vmatprep.subr.mxu0 0.0
    %364 = vmatpush1.xpose.msra.mxu0 0.0
    %365 = vmatprep.subr.mxu0 0.0
    %366 = vmatpush1.xpose.msra.mxu0 0.0
    %367 = vmatprep.subr.mxu0 0.0
    %368 = vmatpush1.xpose.msra.mxu0 0.0
    %369 = vmatprep.subr.mxu0 0.0
    %370 = vmatpush1.xpose.msra.mxu0 0.0
    %371 = vmatprep.subr.mxu0 0.0
    %372 = vmatpush1.xpose.msra.mxu0 0.0
    %373 = vmatprep.subr.mxu0 0.0
    %374 = vmatpush1.xpose.msra.mxu0 0.0
    %375 = vmatprep.subr.mxu0 0.0
    %376 = vmatpush1.xpose.msra.mxu0 %v343
    %377 = vmatprep.subr.mxu0 0.0
    %378 = vmatpush2.xpose.msra.mxu0 0.0
    %379 = vmatprep.subr.mxu0 0.0
    %380 = vmatpush2.xpose.msra.mxu0 0.0
    %381 = vmatprep.subr.mxu0 0.0
    %382 = vmatpush2.xpose.msra.mxu0 0.0
    %383 = vmatprep.subr.mxu0 0.0
    %384 = vmatpush2.xpose.msra.mxu0 0.0
    %385 = vmatprep.subr.mxu0 0.0
    %386 = vmatpush2.xpose.msra.mxu0 0.0
    %387 = vmatprep.subr.mxu0 0.0
    %388 = vmatpush2.xpose.msra.mxu0 0.0
    %389 = vmatprep.subr.mxu0 0.0
    %390 = vmatpush2.xpose.msra.mxu0 0.0
    %391 = vmatprep.subr.mxu0 0.0
    %392 = vmatpush2.xpose.msra.mxu0 0.0
    %393 = vmatprep.subr.mxu0 0.0
    %394 = vmatpush2.xpose.msra.mxu0 0.0
    %395 = vmatprep.subr.mxu0 0.0
    %396 = vmatpush2.xpose.msra.mxu0 0.0
    %397 = vmatprep.subr.mxu0 0.0
    %398 = vmatpush2.xpose.msra.mxu0 0.0
    %399 = vmatprep.subr.mxu0 0.0
    %400 = vmatpush2.xpose.msra.mxu0 0.0
    %401 = vmatprep.subr.mxu0 0.0
    %402 = vmatpush2.xpose.msra.mxu0 0.0
    %403 = vmatprep.subr.mxu0 0.0
    %404 = vmatpush2.xpose.msra.mxu0 0.0
    %405 = vmatprep.subr.mxu0 0.0
    %406 = vmatpush2.xpose.msra.mxu0 0.0
    %407 = vmatprep.subr.mxu0 0.0
    %408 = vmatpush2.xpose.msra.mxu0 0.0
    %409 = vmatprep.mubr.f32.mxu0 0.0
    %410 = vmatmul.mubr.f32.gmra.mxu0 %v340
    %v411 = vpop.f32.mrf.mxu0
    %v412 = vadd.f32 0.0, %v411
    %v413 = vpop.f32.mrf.mxu0
    %414 = vdwg.mxu0
    %v416 = vsel %vm110, %v82, 0
    %v419 = vsel %vm110, %v90, 0
    %421 = vmatprep.subr.mxu0 0.0
    %422 = vmatpush1.xpose.msra.mxu0 0.0
    %423 = vmatprep.subr.mxu0 0.0
    %424 = vmatpush1.xpose.msra.mxu0 0.0
    %425 = vmatprep.subr.mxu0 0.0
    %426 = vmatpush1.xpose.msra.mxu0 0.0
    %427 = vmatprep.subr.mxu0 0.0
    %428 = vmatpush1.xpose.msra.mxu0 0.0
    %429 = vmatprep.subr.mxu0 0.0
    %430 = vmatpush1.xpose.msra.mxu0 0.0
    %431 = vmatprep.subr.mxu0 0.0
    %432 = vmatpush1.xpose.msra.mxu0 0.0
    %433 = vmatprep.subr.mxu0 0.0
    %434 = vmatpush1.xpose.msra.mxu0 0.0
    %435 = vmatprep.subr.mxu0 0.0
    %436 = vmatpush1.xpose.msra.mxu0 0.0
    %437 = vmatprep.subr.mxu0 0.0
    %438 = vmatpush1.xpose.msra.mxu0 0.0
    %439 = vmatprep.subr.mxu0 0.0
    %440 = vmatpush1.xpose.msra.mxu0 0.0
    %441 = vmatprep.subr.mxu0 0.0
    %442 = vmatpush1.xpose.msra.mxu0 0.0
    %443 = vmatprep.subr.mxu0 0.0
    %444 = vmatpush1.xpose.msra.mxu0 0.0
    %445 = vmatprep.subr.mxu0 0.0
    %446 = vmatpush1.xpose.msra.mxu0 0.0
    %447 = vmatprep.subr.mxu0 0.0
    %448 = vmatpush1.xpose.msra.mxu0 0.0
    %449 = vmatprep.subr.mxu0 0.0
    %450 = vmatpush1.xpose.msra.mxu0 0.0
    %451 = vmatprep.subr.mxu0 0.0
    %452 = vmatpush1.xpose.msra.mxu0 %v419
    %453 = vmatprep.subr.mxu0 0.0
    %454 = vmatpush2.xpose.msra.mxu0 0.0
    %455 = vmatprep.subr.mxu0 0.0
    %456 = vmatpush2.xpose.msra.mxu0 0.0
    %457 = vmatprep.subr.mxu0 0.0
    %458 = vmatpush2.xpose.msra.mxu0 0.0
    %459 = vmatprep.subr.mxu0 0.0
    %460 = vmatpush2.xpose.msra.mxu0 0.0
    %461 = vmatprep.subr.mxu0 0.0
    %462 = vmatpush2.xpose.msra.mxu0 0.0
    %463 = vmatprep.subr.mxu0 0.0
    %464 = vmatpush2.xpose.msra.mxu0 0.0
    %465 = vmatprep.subr.mxu0 0.0
    %466 = vmatpush2.xpose.msra.mxu0 0.0
    %467 = vmatprep.subr.mxu0 0.0
    %468 = vmatpush2.xpose.msra.mxu0 0.0
    %469 = vmatprep.subr.mxu0 0.0
    %470 = vmatpush2.xpose.msra.mxu0 0.0
    %471 = vmatprep.subr.mxu0 0.0
    %472 = vmatpush2.xpose.msra.mxu0 0.0
    %473 = vmatprep.subr.mxu0 0.0
    %474 = vmatpush2.xpose.msra.mxu0 0.0
    %475 = vmatprep.subr.mxu0 0.0
    %476 = vmatpush2.xpose.msra.mxu0 0.0
    %477 = vmatprep.subr.mxu0 0.0
    %478 = vmatpush2.xpose.msra.mxu0 0.0
    %479 = vmatprep.subr.mxu0 0.0
    %480 = vmatpush2.xpose.msra.mxu0 0.0
    %481 = vmatprep.subr.mxu0 0.0
    %482 = vmatpush2.xpose.msra.mxu0 0.0
    %483 = vmatprep.subr.mxu0 0.0
    %484 = vmatpush2.xpose.msra.mxu0 0.0
    %485 = vmatprep.mubr.f32.mxu0 0.0
    %486 = vmatmul.mubr.f32.gmra.mxu0 %v416
    %v487 = vpop.f32.mrf.mxu0
    %v488 = vadd.f32 0.0, %v487
    %v489 = vpop.f32.mrf.mxu0
    %490 = vdwg.mxu0
    %v492 = vsel %vm110, %v83, 0
    %v495 = vsel %vm110, %v91, 0
    %497 = vmatprep.subr.mxu0 0.0
    %498 = vmatpush1.xpose.msra.mxu0 0.0
    %499 = vmatprep.subr.mxu0 0.0
    %500 = vmatpush1.xpose.msra.mxu0 0.0
    %501 = vmatprep.subr.mxu0 0.0
    %502 = vmatpush1.xpose.msra.mxu0 0.0
    %503 = vmatprep.subr.mxu0 0.0
    %504 = vmatpush1.xpose.msra.mxu0 0.0
    %505 = vmatprep.subr.mxu0 0.0
    %506 = vmatpush1.xpose.msra.mxu0 0.0
    %507 = vmatprep.subr.mxu0 0.0
    %508 = vmatpush1.xpose.msra.mxu0 0.0
    %509 = vmatprep.subr.mxu0 0.0
    %510 = vmatpush1.xpose.msra.mxu0 0.0
    %511 = vmatprep.subr.mxu0 0.0
    %512 = vmatpush1.xpose.msra.mxu0 0.0
    %513 = vmatprep.subr.mxu0 0.0
    %514 = vmatpush1.xpose.msra.mxu0 0.0
    %515 = vmatprep.subr.mxu0 0.0
    %516 = vmatpush1.xpose.msra.mxu0 0.0
    %517 = vmatprep.subr.mxu0 0.0
    %518 = vmatpush1.xpose.msra.mxu0 0.0
    %519 = vmatprep.subr.mxu0 0.0
    %520 = vmatpush1.xpose.msra.mxu0 0.0
    %521 = vmatprep.subr.mxu0 0.0
    %522 = vmatpush1.xpose.msra.mxu0 0.0
    %523 = vmatprep.subr.mxu0 0.0
    %524 = vmatpush1.xpose.msra.mxu0 0.0
    %525 = vmatprep.subr.mxu0 0.0
    %526 = vmatpush1.xpose.msra.mxu0 0.0
    %527 = vmatprep.subr.mxu0 0.0
    %528 = vmatpush1.xpose.msra.mxu0 %v495
    %529 = vmatprep.subr.mxu0 0.0
    %530 = vmatpush2.xpose.msra.mxu0 0.0
    %531 = vmatprep.subr.mxu0 0.0
    %532 = vmatpush2.xpose.msra.mxu0 0.0
    %533 = vmatprep.subr.mxu0 0.0
    %534 = vmatpush2.xpose.msra.mxu0 0.0
    %535 = vmatprep.subr.mxu0 0.0
    %536 = vmatpush2.xpose.msra.mxu0 0.0
    %537 = vmatprep.subr.mxu0 0.0
    %538 = vmatpush2.xpose.msra.mxu0 0.0
    %539 = vmatprep.subr.mxu0 0.0
    %540 = vmatpush2.xpose.msra.mxu0 0.0
    %541 = vmatprep.subr.mxu0 0.0
    %542 = vmatpush2.xpose.msra.mxu0 0.0
    %543 = vmatprep.subr.mxu0 0.0
    %544 = vmatpush2.xpose.msra.mxu0 0.0
    %545 = vmatprep.subr.mxu0 0.0
    %546 = vmatpush2.xpose.msra.mxu0 0.0
    %547 = vmatprep.subr.mxu0 0.0
    %548 = vmatpush2.xpose.msra.mxu0 0.0
    %549 = vmatprep.subr.mxu0 0.0
    %550 = vmatpush2.xpose.msra.mxu0 0.0
    %551 = vmatprep.subr.mxu0 0.0
    %552 = vmatpush2.xpose.msra.mxu0 0.0
    %553 = vmatprep.subr.mxu0 0.0
    %554 = vmatpush2.xpose.msra.mxu0 0.0
    %555 = vmatprep.subr.mxu0 0.0
    %556 = vmatpush2.xpose.msra.mxu0 0.0
    %557 = vmatprep.subr.mxu0 0.0
    %558 = vmatpush2.xpose.msra.mxu0 0.0
    %559 = vmatprep.subr.mxu0 0.0
    %560 = vmatpush2.xpose.msra.mxu0 0.0
    %561 = vmatprep.mubr.f32.mxu0 0.0
    %562 = vmatmul.mubr.f32.gmra.mxu0 %v492
    %v563 = vpop.f32.mrf.mxu0
    %v564 = vadd.f32 0.0, %v563
    %v565 = vpop.f32.mrf.mxu0
    %566 = vdwg.mxu0
    %v568 = vsel %vm110, %v84, 0
    %v571 = vsel %vm110, %v92, 0
    %573 = vmatprep.subr.mxu0 0.0
    %574 = vmatpush1.xpose.msra.mxu0 0.0
    %575 = vmatprep.subr.mxu0 0.0
    %576 = vmatpush1.xpose.msra.mxu0 0.0
    %577 = vmatprep.subr.mxu0 0.0
    %578 = vmatpush1.xpose.msra.mxu0 0.0
    %579 = vmatprep.subr.mxu0 0.0
    %580 = vmatpush1.xpose.msra.mxu0 0.0
    %581 = vmatprep.subr.mxu0 0.0
    %582 = vmatpush1.xpose.msra.mxu0 0.0
    %583 = vmatprep.subr.mxu0 0.0
    %584 = vmatpush1.xpose.msra.mxu0 0.0
    %585 = vmatprep.subr.mxu0 0.0
    %586 = vmatpush1.xpose.msra.mxu0 0.0
    %587 = vmatprep.subr.mxu0 0.0
    %588 = vmatpush1.xpose.msra.mxu0 0.0
    %589 = vmatprep.subr.mxu0 0.0
    %590 = vmatpush1.xpose.msra.mxu0 0.0
    %591 = vmatprep.subr.mxu0 0.0
    %592 = vmatpush1.xpose.msra.mxu0 0.0
    %593 = vmatprep.subr.mxu0 0.0
    %594 = vmatpush1.xpose.msra.mxu0 0.0
    %595 = vmatprep.subr.mxu0 0.0
    %596 = vmatpush1.xpose.msra.mxu0 0.0
    %597 = vmatprep.subr.mxu0 0.0
    %598 = vmatpush1.xpose.msra.mxu0 0.0
    %599 = vmatprep.subr.mxu0 0.0
    %600 = vmatpush1.xpose.msra.mxu0 0.0
    %601 = vmatprep.subr.mxu0 0.0
    %602 = vmatpush1.xpose.msra.mxu0 0.0
    %603 = vmatprep.subr.mxu0 0.0
    %604 = vmatpush1.xpose.msra.mxu0 %v571
    %605 = vmatprep.subr.mxu0 0.0
    %606 = vmatpush2.xpose.msra.mxu0 0.0
    %607 = vmatprep.subr.mxu0 0.0
    %608 = vmatpush2.xpose.msra.mxu0 0.0
    %609 = vmatprep.subr.mxu0 0.0
    %610 = vmatpush2.xpose.msra.mxu0 0.0
    %611 = vmatprep.subr.mxu0 0.0
    %612 = vmatpush2.xpose.msra.mxu0 0.0
    %613 = vmatprep.subr.mxu0 0.0
    %614 = vmatpush2.xpose.msra.mxu0 0.0
    %615 = vmatprep.subr.mxu0 0.0
    %616 = vmatpush2.xpose.msra.mxu0 0.0
    %617 = vmatprep.subr.mxu0 0.0
    %618 = vmatpush2.xpose.msra.mxu0 0.0
    %619 = vmatprep.subr.mxu0 0.0
    %620 = vmatpush2.xpose.msra.mxu0 0.0
    %621 = vmatprep.subr.mxu0 0.0
    %622 = vmatpush2.xpose.msra.mxu0 0.0
    %623 = vmatprep.subr.mxu0 0.0
    %624 = vmatpush2.xpose.msra.mxu0 0.0
    %625 = vmatprep.subr.mxu0 0.0
    %626 = vmatpush2.xpose.msra.mxu0 0.0
    %627 = vmatprep.subr.mxu0 0.0
    %628 = vmatpush2.xpose.msra.mxu0 0.0
    %629 = vmatprep.subr.mxu0 0.0
    %630 = vmatpush2.xpose.msra.mxu0 0.0
    %631 = vmatprep.subr.mxu0 0.0
    %632 = vmatpush2.xpose.msra.mxu0 0.0
    %633 = vmatprep.subr.mxu0 0.0
    %634 = vmatpush2.xpose.msra.mxu0 0.0
    %635 = vmatprep.subr.mxu0 0.0
    %636 = vmatpush2.xpose.msra.mxu0 0.0
    %637 = vmatprep.mubr.f32.mxu0 0.0
    %638 = vmatmul.mubr.f32.gmra.mxu0 %v568
    %v639 = vpop.f32.mrf.mxu0
    %v640 = vadd.f32 0.0, %v639
    %v641 = vpop.f32.mrf.mxu0
    %642 = vdwg.mxu0
    %v644 = vsel %vm110, %v85, 0
    %v647 = vsel %vm110, %v93, 0
    %649 = vmatprep.subr.mxu0 0.0
    %650 = vmatpush1.xpose.msra.mxu0 0.0
    %651 = vmatprep.subr.mxu0 0.0
    %652 = vmatpush1.xpose.msra.mxu0 0.0
    %653 = vmatprep.subr.mxu0 0.0
    %654 = vmatpush1.xpose.msra.mxu0 0.0
    %655 = vmatprep.subr.mxu0 0.0
    %656 = vmatpush1.xpose.msra.mxu0 0.0
    %657 = vmatprep.subr.mxu0 0.0
    %658 = vmatpush1.xpose.msra.mxu0 0.0
    %659 = vmatprep.subr.mxu0 0.0
    %660 = vmatpush1.xpose.msra.mxu0 0.0
    %661 = vmatprep.subr.mxu0 0.0
    %662 = vmatpush1.xpose.msra.mxu0 0.0
    %663 = vmatprep.subr.mxu0 0.0
    %664 = vmatpush1.xpose.msra.mxu0 0.0
    %665 = vmatprep.subr.mxu0 0.0
    %666 = vmatpush1.xpose.msra.mxu0 0.0
    %667 = vmatprep.subr.mxu0 0.0
    %668 = vmatpush1.xpose.msra.mxu0 0.0
    %669 = vmatprep.subr.mxu0 0.0
    %670 = vmatpush1.xpose.msra.mxu0 0.0
    %671 = vmatprep.subr.mxu0 0.0
    %672 = vmatpush1.xpose.msra.mxu0 0.0
    %673 = vmatprep.subr.mxu0 0.0
    %674 = vmatpush1.xpose.msra.mxu0 0.0
    %675 = vmatprep.subr.mxu0 0.0
    %676 = vmatpush1.xpose.msra.mxu0 0.0
    %677 = vmatprep.subr.mxu0 0.0
    %678 = vmatpush1.xpose.msra.mxu0 0.0
    %679 = vmatprep.subr.mxu0 0.0
    %680 = vmatpush1.xpose.msra.mxu0 %v647
    %681 = vmatprep.subr.mxu0 0.0
    %682 = vmatpush2.xpose.msra.mxu0 0.0
    %683 = vmatprep.subr.mxu0 0.0
    %684 = vmatpush2.xpose.msra.mxu0 0.0
    %685 = vmatprep.subr.mxu0 0.0
    %686 = vmatpush2.xpose.msra.mxu0 0.0
    %687 = vmatprep.subr.mxu0 0.0
    %688 = vmatpush2.xpose.msra.mxu0 0.0
    %689 = vmatprep.subr.mxu0 0.0
    %690 = vmatpush2.xpose.msra.mxu0 0.0
    %691 = vmatprep.subr.mxu0 0.0
    %692 = vmatpush2.xpose.msra.mxu0 0.0
    %693 = vmatprep.subr.mxu0 0.0
    %694 = vmatpush2.xpose.msra.mxu0 0.0
    %695 = vmatprep.subr.mxu0 0.0
    %696 = vmatpush2.xpose.msra.mxu0 0.0
    %697 = vmatprep.subr.mxu0 0.0
    %698 = vmatpush2.xpose.msra.mxu0 0.0
    %699 = vmatprep.subr.mxu0 0.0
    %700 = vmatpush2.xpose.msra.mxu0 0.0
    %701 = vmatprep.subr.mxu0 0.0
    %702 = vmatpush2.xpose.msra.mxu0 0.0
    %703 = vmatprep.subr.mxu0 0.0
    %704 = vmatpush2.xpose.msra.mxu0 0.0
    %705 = vmatprep.subr.mxu0 0.0
    %706 = vmatpush2.xpose.msra.mxu0 0.0
    %707 = vmatprep.subr.mxu0 0.0
    %708 = vmatpush2.xpose.msra.mxu0 0.0
    %709 = vmatprep.subr.mxu0 0.0
    %710 = vmatpush2.xpose.msra.mxu0 0.0
    %711 = vmatprep.subr.mxu0 0.0
    %712 = vmatpush2.xpose.msra.mxu0 0.0
    %713 = vmatprep.mubr.f32.mxu0 0.0
    %714 = vmatmul.mubr.f32.gmra.mxu0 %v644
    %v715 = vpop.f32.mrf.mxu0
    %v716 = vadd.f32 0.0, %v715
    %v717 = vpop.f32.mrf.mxu0
    %718 = vdwg.mxu0
    %v719 = vmul.f32 %v184, 0.17677669
    %v720 = vmul.f32 %v260, 0.17677669
    %v721 = vmul.f32 %v336, 0.17677669
    %v722 = vmul.f32 %v412, 0.17677669
    %v723 = vmul.f32 %v488, 0.17677669
    %v724 = vmul.f32 %v564, 0.17677669
    %v725 = vmul.f32 %v640, 0.17677669
    %v726 = vmul.f32 %v716, 0.17677669
    %vm727 = vnez %v102
    %vm728 = vnez %v103
    %vm729 = vnez %v104
    %vm730 = vnez %v105
    %vm731 = vnez %v106
    %vm732 = vnez %v107
    %vm733 = vnez %v108
    %vm734 = vnez %v109
    %v735 = vsel %vm727, 16843009, 0
    %v736 = vsel %vm728, 16843009, 0
    %v737 = vsel %vm729, 16843009, 0
    %v738 = vsel %vm730, 16843009, 0
    %v739 = vsel %vm731, 16843009, 0
    %v740 = vsel %vm732, 16843009, 0
    %v741 = vsel %vm733, 16843009, 0
    %v742 = vsel %vm734, 16843009, 0
    %v743 = vunpack.c.0.s8 %v735
    %v744 = vunpack.c.0.s8 %v736
    %v745 = vunpack.c.0.s8 %v737
    %v746 = vunpack.c.0.s8 %v738
    %v747 = vunpack.c.0.s8 %v739
    %v748 = vunpack.c.0.s8 %v740
    %v749 = vunpack.c.0.s8 %v741
    %v750 = vunpack.c.0.s8 %v742
    %vm751 = vcmp.ne.s32.totalorder %v743, 0
    %vm752 = vcmp.ne.s32.totalorder %v744, 0
    %vm753 = vcmp.ne.s32.totalorder %v745, 0
    %vm754 = vcmp.ne.s32.totalorder %v746, 0
    %vm755 = vcmp.ne.s32.totalorder %v747, 0
    %vm756 = vcmp.ne.s32.totalorder %v748, 0
    %vm757 = vcmp.ne.s32.totalorder %v749, 0
    %vm758 = vcmp.ne.s32.totalorder %v750, 0
    %v759 = vsel %vm751, -1e+09, %v719
    %v760 = vsel %vm752, -1e+09, %v720
    %v761 = vsel %vm753, -1e+09, %v721
    %v762 = vsel %vm754, -1e+09, %v722
    %v763 = vsel %vm755, -1e+09, %v723
    %v764 = vsel %vm756, -1e+09, %v724
    %v765 = vsel %vm757, -1e+09, %v725
    %v766 = vsel %vm758, -1e+09, %v726
    %vm767 = vcmask 64512
    %v768 = vsel %vm767, %v759, -inf
    %769 = vmax.xlane.f32.xlu0 %v768
    %v770 = vpop.xlane.xlu0 %769
    %v771 = vsel %vm767, %v760, -inf
    %772 = vmax.xlane.f32.xlu0 %v771
    %v773 = vpop.xlane.xlu0 %772
    %v774 = vsel %vm767, %v761, -inf
    %775 = vmax.xlane.f32.xlu0 %v774
    %v776 = vpop.xlane.xlu0 %775
    %v777 = vsel %vm767, %v762, -inf
    %778 = vmax.xlane.f32.xlu0 %v777
    %v779 = vpop.xlane.xlu0 %778
    %v780 = vsel %vm767, %v763, -inf
    %781 = vmax.xlane.f32.xlu0 %v780
    %v782 = vpop.xlane.xlu0 %781
    %v783 = vsel %vm767, %v764, -inf
    %784 = vmax.xlane.f32.xlu0 %v783
    %v785 = vpop.xlane.xlu0 %784
    %v786 = vsel %vm767, %v765, -inf
    %787 = vmax.xlane.f32.xlu0 %v786
    %v788 = vpop.xlane.xlu0 %787
    %v789 = vsel %vm767, %v766, -inf
    %790 = vmax.xlane.f32.xlu0 %v789
    %v791 = vpop.xlane.xlu0 %790
    %v792 = vsub.f32 %v759, %v770
    %v793 = vsub.f32 %v760, %v773
    %v794 = vsub.f32 %v761, %v776
    %v795 = vsub.f32 %v762, %v779
    %v796 = vsub.f32 %v763, %v782
    %v797 = vsub.f32 %v764, %v785
    %v798 = vsub.f32 %v765, %v788
    %v799 = vsub.f32 %v766, %v791
    %v800 = vmul.f32 %v792, 1.442695
    %v801 = vpow.pop %v800
    %v802 = vmul.f32 %v793, 1.442695
    %v803 = vpow.pop %v802
    %v804 = vmul.f32 %v794, 1.442695
    %v805 = vpow.pop %v804
    %v806 = vmul.f32 %v795, 1.442695
    %v807 = vpow.pop %v806
    %v808 = vmul.f32 %v796, 1.442695
    %v809 = vpow.pop %v808
    %v810 = vmul.f32 %v797, 1.442695
    %v811 = vpow.pop %v810
    %v812 = vmul.f32 %v798, 1.442695
    %v813 = vpow.pop %v812
    %v814 = vmul.f32 %v799, 1.442695
    %v815 = vpow.pop %v814
    %v816 = vsel %vm767, %v801, 0.0
    %817 = vadd.xlane.f32.xlu0 %v816
    %v818 = vpop.xlane.xlu0 %817
    %v819 = vsel %vm767, %v803, 0.0
    %820 = vadd.xlane.f32.xlu0 %v819
    %v821 = vpop.xlane.xlu0 %820
    %v822 = vsel %vm767, %v805, 0.0
    %823 = vadd.xlane.f32.xlu0 %v822
    %v824 = vpop.xlane.xlu0 %823
    %v825 = vsel %vm767, %v807, 0.0
    %826 = vadd.xlane.f32.xlu0 %v825
    %v827 = vpop.xlane.xlu0 %826
    %v828 = vsel %vm767, %v809, 0.0
    %829 = vadd.xlane.f32.xlu0 %v828
    %v830 = vpop.xlane.xlu0 %829
    %v831 = vsel %vm767, %v811, 0.0
    %832 = vadd.xlane.f32.xlu0 %v831
    %v833 = vpop.xlane.xlu0 %832
    %v834 = vsel %vm767, %v813, 0.0
    %835 = vadd.xlane.f32.xlu0 %v834
    %v836 = vpop.xlane.xlu0 %835
    %v837 = vsel %vm767, %v815, 0.0
    %838 = vadd.xlane.f32.xlu0 %v837
    %v839 = vpop.xlane.xlu0 %838
    %v840 = vrcp.pop %v818
    %v841 = vrcp.pop %v821
    %v842 = vrcp.pop %v824
    %v843 = vrcp.pop %v827
    %v844 = vrcp.pop %v830
    %v845 = vrcp.pop %v833
    %v846 = vrcp.pop %v836
    %v847 = vrcp.pop %v839
    %v848 = vmul.f32 %v818, %v840
    %v849 = vmul.f32 %v821, %v841
    %v850 = vmul.f32 %v824, %v842
    %v851 = vmul.f32 %v827, %v843
    %v852 = vmul.f32 %v830, %v844
    %v853 = vmul.f32 %v833, %v845
    %v854 = vmul.f32 %v836, %v846
    %v855 = vmul.f32 %v839, %v847
    %v856 = vsub.f32 2.0, %v848
    %v857 = vsub.f32 2.0, %v849
    %v858 = vsub.f32 2.0, %v850
    %v859 = vsub.f32 2.0, %v851
    %v860 = vsub.f32 2.0, %v852
    %v861 = vsub.f32 2.0, %v853
    %v862 = vsub.f32 2.0, %v854
    %v863 = vsub.f32 2.0, %v855
    %v864 = vmul.f32 %v840, %v856
    %v865 = vmul.f32 %v841, %v857
    %v866 = vmul.f32 %v842, %v858
    %v867 = vmul.f32 %v843, %v859
    %v868 = vmul.f32 %v844, %v860
    %v869 = vmul.f32 %v845, %v861
    %v870 = vmul.f32 %v846, %v862
    %v871 = vmul.f32 %v847, %v863
    %v872 = vmul.f32 %v801, %v864
    %v873 = vmul.f32 %v803, %v865
    %v874 = vmul.f32 %v805, %v866
    %v875 = vmul.f32 %v807, %v867
    %v876 = vmul.f32 %v809, %v868
    %v877 = vmul.f32 %v811, %v869
    %v878 = vmul.f32 %v813, %v870
    %v879 = vmul.f32 %v815, %v871
    %880 = vst.msk [vmem:[#allocation11] sm:$0xff] %vm767, %v872
    %881 = vst.msk [vmem:[#allocation11 + $0x8] sm:$0xff] %vm767, %v873
    %882 = vst.msk [vmem:[#allocation11 + $0x10] sm:$0xff] %vm767, %v874
    %883 = vst.msk [vmem:[#allocation11 + $0x18] sm:$0xff] %vm767, %v875
    %884 = vst.msk [vmem:[#allocation11 + $0x20] sm:$0xff] %vm767, %v876
    %885 = vst.msk [vmem:[#allocation11 + $0x28] sm:$0xff] %vm767, %v877
    %886 = vst.msk [vmem:[#allocation11 + $0x30] sm:$0xff] %vm767, %v878
    %887 = vst.msk [vmem:[#allocation11 + $0x38] sm:$0xff] %vm767, %v879
    %v889 = vsel %vm767, %v872, 0
    %891 = vmatprep.subr.mxu0 0.0
    %892 = vmatpush1.msra.mxu0 0.0
    %893 = vmatprep.subr.mxu0 0.0
    %894 = vmatpush1.msra.mxu0 0.0
    %895 = vmatprep.subr.mxu0 0.0
    %896 = vmatpush1.msra.mxu0 0.0
    %897 = vmatprep.subr.mxu0 0.0
    %898 = vmatpush1.msra.mxu0 0.0
    %899 = vmatprep.subr.mxu0 0.0
    %900 = vmatpush1.msra.mxu0 0.0
    %901 = vmatprep.subr.mxu0 0.0
    %902 = vmatpush1.msra.mxu0 0.0
    %903 = vmatprep.subr.mxu0 0.0
    %904 = vmatpush1.msra.mxu0 0.0
    %905 = vmatprep.subr.mxu0 0.0
    %906 = vmatpush1.msra.mxu0 0.0
    %907 = vmatprep.subr.mxu0 0.0
    %908 = vmatpush1.msra.mxu0 0.0
    %909 = vmatprep.subr.mxu0 0.0
    %910 = vmatpush1.msra.mxu0 0.0
    %911 = vmatprep.subr.mxu0 0.0
    %912 = vmatpush1.msra.mxu0 0.0
    %913 = vmatprep.subr.mxu0 0.0
    %914 = vmatpush1.msra.mxu0 0.0
    %915 = vmatprep.subr.mxu0 0.0
    %916 = vmatpush1.msra.mxu0 0.0
    %917 = vmatprep.subr.mxu0 0.0
    %918 = vmatpush1.msra.mxu0 0.0
    %919 = vmatprep.subr.mxu0 0.0
    %920 = vmatpush1.msra.mxu0 0.0
    %921 = vmatprep.subr.mxu0 0.0
    %922 = vmatpush1.msra.mxu0 %v94
    %923 = vmatprep.subr.mxu0 0.0
    %924 = vmatpush2.msra.mxu0 0.0
    %925 = vmatprep.subr.mxu0 0.0
    %926 = vmatpush2.msra.mxu0 0.0
    %927 = vmatprep.subr.mxu0 0.0
    %928 = vmatpush2.msra.mxu0 0.0
    %929 = vmatprep.subr.mxu0 0.0
    %930 = vmatpush2.msra.mxu0 0.0
    %931 = vmatprep.subr.mxu0 0.0
    %932 = vmatpush2.msra.mxu0 0.0
    %933 = vmatprep.subr.mxu0 0.0
    %934 = vmatpush2.msra.mxu0 0.0
    %935 = vmatprep.subr.mxu0 0.0
    %936 = vmatpush2.msra.mxu0 0.0
    %937 = vmatprep.subr.mxu0 0.0
    %938 = vmatpush2.msra.mxu0 0.0
    %939 = vmatprep.subr.mxu0 0.0
    %940 = vmatpush2.msra.mxu0 0.0
    %941 = vmatprep.subr.mxu0 0.0
    %942 = vmatpush2.msra.mxu0 0.0
    %943 = vmatprep.subr.mxu0 0.0
    %944 = vmatpush2.msra.mxu0 0.0
    %945 = vmatprep.subr.mxu0 0.0
    %946 = vmatpush2.msra.mxu0 0.0
    %947 = vmatprep.subr.mxu0 0.0
    %948 = vmatpush2.msra.mxu0 0.0
    %949 = vmatprep.subr.mxu0 0.0
    %950 = vmatpush2.msra.mxu0 0.0
    %951 = vmatprep.subr.mxu0 0.0
    %952 = vmatpush2.msra.mxu0 0.0
    %953 = vmatprep.subr.mxu0 0.0
    %954 = vmatpush2.msra.mxu0 0.0
    %955 = vmatprep.mubr.f32.mxu0 0.0
    %956 = vmatmul.mubr.f32.gmra.mxu0 %v889
    %v957 = vpop.f32.mrf.mxu0
    %v958 = vadd.f32 0.0, %v957
    %v959 = vpop.f32.mrf.mxu0
    %960 = vdwg.mxu0
    %v962 = vsel %vm767, %v873, 0
    %964 = vmatprep.subr.mxu0 0.0
    %965 = vmatpush1.msra.mxu0 0.0
    %966 = vmatprep.subr.mxu0 0.0
    %967 = vmatpush1.msra.mxu0 0.0
    %968 = vmatprep.subr.mxu0 0.0
    %969 = vmatpush1.msra.mxu0 0.0
    %970 = vmatprep.subr.mxu0 0.0
    %971 = vmatpush1.msra.mxu0 0.0
    %972 = vmatprep.subr.mxu0 0.0
    %973 = vmatpush1.msra.mxu0 0.0
    %974 = vmatprep.subr.mxu0 0.0
    %975 = vmatpush1.msra.mxu0 0.0
    %976 = vmatprep.subr.mxu0 0.0
    %977 = vmatpush1.msra.mxu0 0.0
    %978 = vmatprep.subr.mxu0 0.0
    %979 = vmatpush1.msra.mxu0 0.0
    %980 = vmatprep.subr.mxu0 0.0
    %981 = vmatpush1.msra.mxu0 0.0
    %982 = vmatprep.subr.mxu0 0.0
    %983 = vmatpush1.msra.mxu0 0.0
    %984 = vmatprep.subr.mxu0 0.0
    %985 = vmatpush1.msra.mxu0 0.0
    %986 = vmatprep.subr.mxu0 0.0
    %987 = vmatpush1.msra.mxu0 0.0
    %988 = vmatprep.subr.mxu0 0.0
    %989 = vmatpush1.msra.mxu0 0.0
    %990 = vmatprep.subr.mxu0 0.0
    %991 = vmatpush1.msra.mxu0 0.0
    %992 = vmatprep.subr.mxu0 0.0
    %993 = vmatpush1.msra.mxu0 0.0
    %994 = vmatprep.subr.mxu0 0.0
    %995 = vmatpush1.msra.mxu0 %v95
    %996 = vmatprep.subr.mxu0 0.0
    %997 = vmatpush2.msra.mxu0 0.0
    %998 = vmatprep.subr.mxu0 0.0
    %999 = vmatpush2.msra.mxu0 0.0
    %1000 = vmatprep.subr.mxu0 0.0
    %1001 = vmatpush2.msra.mxu0 0.0
    %1002 = vmatprep.subr.mxu0 0.0
    %1003 = vmatpush2.msra.mxu0 0.0
    %1004 = vmatprep.subr.mxu0 0.0
    %1005 = vmatpush2.msra.mxu0 0.0
    %1006 = vmatprep.subr.mxu0 0.0
    %1007 = vmatpush2.msra.mxu0 0.0
    %1008 = vmatprep.subr.mxu0 0.0
    %1009 = vmatpush2.msra.mxu0 0.0
    %1010 = vmatprep.subr.mxu0 0.0
    %1011 = vmatpush2.msra.mxu0 0.0
    %1012 = vmatprep.subr.mxu0 0.0
    %1013 = vmatpush2.msra.mxu0 0.0
    %1014 = vmatprep.subr.mxu0 0.0
    %1015 = vmatpush2.msra.mxu0 0.0
    %1016 = vmatprep.subr.mxu0 0.0
    %1017 = vmatpush2.msra.mxu0 0.0
    %1018 = vmatprep.subr.mxu0 0.0
    %1019 = vmatpush2.msra.mxu0 0.0
    %1020 = vmatprep.subr.mxu0 0.0
    %1021 = vmatpush2.msra.mxu0 0.0
    %1022 = vmatprep.subr.mxu0 0.0
    %1023 = vmatpush2.msra.mxu0 0.0
    %1024 = vmatprep.subr.mxu0 0.0
    %1025 = vmatpush2.msra.mxu0 0.0
    %1026 = vmatprep.subr.mxu0 0.0
    %1027 = vmatpush2.msra.mxu0 0.0
    %1028 = vmatprep.mubr.f32.mxu0 0.0
    %1029 = vmatmul.mubr.f32.gmra.mxu0 %v962
    %v1030 = vpop.f32.mrf.mxu0
    %v1031 = vadd.f32 0.0, %v1030
    %v1032 = vpop.f32.mrf.mxu0
    %1033 = vdwg.mxu0
    %v1035 = vsel %vm767, %v874, 0
    %1037 = vmatprep.subr.mxu0 0.0
    %1038 = vmatpush1.msra.mxu0 0.0
    %1039 = vmatprep.subr.mxu0 0.0
    %1040 = vmatpush1.msra.mxu0 0.0
    %1041 = vmatprep.subr.mxu0 0.0
    %1042 = vmatpush1.msra.mxu0 0.0
    %1043 = vmatprep.subr.mxu0 0.0
    %1044 = vmatpush1.msra.mxu0 0.0
    %1045 = vmatprep.subr.mxu0 0.0
    %1046 = vmatpush1.msra.mxu0 0.0
    %1047 = vmatprep.subr.mxu0 0.0
    %1048 = vmatpush1.msra.mxu0 0.0
    %1049 = vmatprep.subr.mxu0 0.0
    %1050 = vmatpush1.msra.mxu0 0.0
    %1051 = vmatprep.subr.mxu0 0.0
    %1052 = vmatpush1.msra.mxu0 0.0
    %1053 = vmatprep.subr.mxu0 0.0
    %1054 = vmatpush1.msra.mxu0 0.0
    %1055 = vmatprep.subr.mxu0 0.0
    %1056 = vmatpush1.msra.mxu0 0.0
    %1057 = vmatprep.subr.mxu0 0.0
    %1058 = vmatpush1.msra.mxu0 0.0
    %1059 = vmatprep.subr.mxu0 0.0
    %1060 = vmatpush1.msra.mxu0 0.0
    %1061 = vmatprep.subr.mxu0 0.0
    %1062 = vmatpush1.msra.mxu0 0.0
    %1063 = vmatprep.subr.mxu0 0.0
    %1064 = vmatpush1.msra.mxu0 0.0
    %1065 = vmatprep.subr.mxu0 0.0
    %1066 = vmatpush1.msra.mxu0 0.0
    %1067 = vmatprep.subr.mxu0 0.0
    %1068 = vmatpush1.msra.mxu0 %v96
    %1069 = vmatprep.subr.mxu0 0.0
    %1070 = vmatpush2.msra.mxu0 0.0
    %1071 = vmatprep.subr.mxu0 0.0
    %1072 = vmatpush2.msra.mxu0 0.0
    %1073 = vmatprep.subr.mxu0 0.0
    %1074 = vmatpush2.msra.mxu0 0.0
    %1075 = vmatprep.subr.mxu0 0.0
    %1076 = vmatpush2.msra.mxu0 0.0
    %1077 = vmatprep.subr.mxu0 0.0
    %1078 = vmatpush2.msra.mxu0 0.0
    %1079 = vmatprep.subr.mxu0 0.0
    %1080 = vmatpush2.msra.mxu0 0.0
    %1081 = vmatprep.subr.mxu0 0.0
    %1082 = vmatpush2.msra.mxu0 0.0
    %1083 = vmatprep.subr.mxu0 0.0
    %1084 = vmatpush2.msra.mxu0 0.0
    %1085 = vmatprep.subr.mxu0 0.0
    %1086 = vmatpush2.msra.mxu0 0.0
    %1087 = vmatprep.subr.mxu0 0.0
    %1088 = vmatpush2.msra.mxu0 0.0
    %1089 = vmatprep.subr.mxu0 0.0
    %1090 = vmatpush2.msra.mxu0 0.0
    %1091 = vmatprep.subr.mxu0 0.0
    %1092 = vmatpush2.msra.mxu0 0.0
    %1093 = vmatprep.subr.mxu0 0.0
    %1094 = vmatpush2.msra.mxu0 0.0
    %1095 = vmatprep.subr.mxu0 0.0
    %1096 = vmatpush2.msra.mxu0 0.0
    %1097 = vmatprep.subr.mxu0 0.0
    %1098 = vmatpush2.msra.mxu0 0.0
    %1099 = vmatprep.subr.mxu0 0.0
    %1100 = vmatpush2.msra.mxu0 0.0
    %1101 = vmatprep.mubr.f32.mxu0 0.0
    %1102 = vmatmul.mubr.f32.gmra.mxu0 %v1035
    %v1103 = vpop.f32.mrf.mxu0
    %v1104 = vadd.f32 0.0, %v1103
    %v1105 = vpop.f32.mrf.mxu0
    %1106 = vdwg.mxu0
    %v1108 = vsel %vm767, %v875, 0
    %1110 = vmatprep.subr.mxu0 0.0
    %1111 = vmatpush1.msra.mxu0 0.0
    %1112 = vmatprep.subr.mxu0 0.0
    %1113 = vmatpush1.msra.mxu0 0.0
    %1114 = vmatprep.subr.mxu0 0.0
    %1115 = vmatpush1.msra.mxu0 0.0
    %1116 = vmatprep.subr.mxu0 0.0
    %1117 = vmatpush1.msra.mxu0 0.0
    %1118 = vmatprep.subr.mxu0 0.0
    %1119 = vmatpush1.msra.mxu0 0.0
    %1120 = vmatprep.subr.mxu0 0.0
    %1121 = vmatpush1.msra.mxu0 0.0
    %1122 = vmatprep.subr.mxu0 0.0
    %1123 = vmatpush1.msra.mxu0 0.0
    %1124 = vmatprep.subr.mxu0 0.0
    %1125 = vmatpush1.msra.mxu0 0.0
    %1126 = vmatprep.subr.mxu0 0.0
    %1127 = vmatpush1.msra.mxu0 0.0
    %1128 = vmatprep.subr.mxu0 0.0
    %1129 = vmatpush1.msra.mxu0 0.0
    %1130 = vmatprep.subr.mxu0 0.0
    %1131 = vmatpush1.msra.mxu0 0.0
    %1132 = vmatprep.subr.mxu0 0.0
    %1133 = vmatpush1.msra.mxu0 0.0
    %1134 = vmatprep.subr.mxu0 0.0
    %1135 = vmatpush1.msra.mxu0 0.0
    %1136 = vmatprep.subr.mxu0 0.0
    %1137 = vmatpush1.msra.mxu0 0.0
    %1138 = vmatprep.subr.mxu0 0.0
    %1139 = vmatpush1.msra.mxu0 0.0
    %1140 = vmatprep.subr.mxu0 0.0
    %1141 = vmatpush1.msra.mxu0 %v97
    %1142 = vmatprep.subr.mxu0 0.0
    %1143 = vmatpush2.msra.mxu0 0.0
    %1144 = vmatprep.subr.mxu0 0.0
    %1145 = vmatpush2.msra.mxu0 0.0
    %1146 = vmatprep.subr.mxu0 0.0
    %1147 = vmatpush2.msra.mxu0 0.0
    %1148 = vmatprep.subr.mxu0 0.0
    %1149 = vmatpush2.msra.mxu0 0.0
    %1150 = vmatprep.subr.mxu0 0.0
    %1151 = vmatpush2.msra.mxu0 0.0
    %1152 = vmatprep.subr.mxu0 0.0
    %1153 = vmatpush2.msra.mxu0 0.0
    %1154 = vmatprep.subr.mxu0 0.0
    %1155 = vmatpush2.msra.mxu0 0.0
    %1156 = vmatprep.subr.mxu0 0.0
    %1157 = vmatpush2.msra.mxu0 0.0
    %1158 = vmatprep.subr.mxu0 0.0
    %1159 = vmatpush2.msra.mxu0 0.0
    %1160 = vmatprep.subr.mxu0 0.0
    %1161 = vmatpush2.msra.mxu0 0.0
    %1162 = vmatprep.subr.mxu0 0.0
    %1163 = vmatpush2.msra.mxu0 0.0
    %1164 = vmatprep.subr.mxu0 0.0
    %1165 = vmatpush2.msra.mxu0 0.0
    %1166 = vmatprep.subr.mxu0 0.0
    %1167 = vmatpush2.msra.mxu0 0.0
    %1168 = vmatprep.subr.mxu0 0.0
    %1169 = vmatpush2.msra.mxu0 0.0
    %1170 = vmatprep.subr.mxu0 0.0
    %1171 = vmatpush2.msra.mxu0 0.0
    %1172 = vmatprep.subr.mxu0 0.0
    %1173 = vmatpush2.msra.mxu0 0.0
    %1174 = vmatprep.mubr.f32.mxu0 0.0
    %1175 = vmatmul.mubr.f32.gmra.mxu0 %v1108
    %v1176 = vpop.f32.mrf.mxu0
    %v1177 = vadd.f32 0.0, %v1176
    %v1178 = vpop.f32.mrf.mxu0
    %1179 = vdwg.mxu0
    %v1181 = vsel %vm767, %v876, 0
    %1183 = vmatprep.subr.mxu0 0.0
    %1184 = vmatpush1.msra.mxu0 0.0
    %1185 = vmatprep.subr.mxu0 0.0
    %1186 = vmatpush1.msra.mxu0 0.0
    %1187 = vmatprep.subr.mxu0 0.0
    %1188 = vmatpush1.msra.mxu0 0.0
    %1189 = vmatprep.subr.mxu0 0.0
    %1190 = vmatpush1.msra.mxu0 0.0
    %1191 = vmatprep.subr.mxu0 0.0
    %1192 = vmatpush1.msra.mxu0 0.0
    %1193 = vmatprep.subr.mxu0 0.0
    %1194 = vmatpush1.msra.mxu0 0.0
    %1195 = vmatprep.subr.mxu0 0.0
    %1196 = vmatpush1.msra.mxu0 0.0
    %1197 = vmatprep.subr.mxu0 0.0
    %1198 = vmatpush1.msra.mxu0 0.0
    %1199 = vmatprep.subr.mxu0 0.0
    %1200 = vmatpush1.msra.mxu0 0.0
    %1201 = vmatprep.subr.mxu0 0.0
    %1202 = vmatpush1.msra.mxu0 0.0
    %1203 = vmatprep.subr.mxu0 0.0
    %1204 = vmatpush1.msra.mxu0 0.0
    %1205 = vmatprep.subr.mxu0 0.0
    %1206 = vmatpush1.msra.mxu0 0.0
    %1207 = vmatprep.subr.mxu0 0.0
    %1208 = vmatpush1.msra.mxu0 0.0
    %1209 = vmatprep.subr.mxu0 0.0
    %1210 = vmatpush1.msra.mxu0 0.0
    %1211 = vmatprep.subr.mxu0 0.0
    %1212 = vmatpush1.msra.mxu0 0.0
    %1213 = vmatprep.subr.mxu0 0.0
    %1214 = vmatpush1.msra.mxu0 %v98
    %1215 = vmatprep.subr.mxu0 0.0
    %1216 = vmatpush2.msra.mxu0 0.0
    %1217 = vmatprep.subr.mxu0 0.0
    %1218 = vmatpush2.msra.mxu0 0.0
    %1219 = vmatprep.subr.mxu0 0.0
    %1220 = vmatpush2.msra.mxu0 0.0
    %1221 = vmatprep.subr.mxu0 0.0
    %1222 = vmatpush2.msra.mxu0 0.0
    %1223 = vmatprep.subr.mxu0 0.0
    %1224 = vmatpush2.msra.mxu0 0.0
    %1225 = vmatprep.subr.mxu0 0.0
    %1226 = vmatpush2.msra.mxu0 0.0
    %1227 = vmatprep.subr.mxu0 0.0
    %1228 = vmatpush2.msra.mxu0 0.0
    %1229 = vmatprep.subr.mxu0 0.0
    %1230 = vmatpush2.msra.mxu0 0.0
    %1231 = vmatprep.subr.mxu0 0.0
    %1232 = vmatpush2.msra.mxu0 0.0
    %1233 = vmatprep.subr.mxu0 0.0
    %1234 = vmatpush2.msra.mxu0 0.0
    %1235 = vmatprep.subr.mxu0 0.0
    %1236 = vmatpush2.msra.mxu0 0.0
    %1237 = vmatprep.subr.mxu0 0.0
    %1238 = vmatpush2.msra.mxu0 0.0
    %1239 = vmatprep.subr.mxu0 0.0
    %1240 = vmatpush2.msra.mxu0 0.0
    %1241 = vmatprep.subr.mxu0 0.0
    %1242 = vmatpush2.msra.mxu0 0.0
    %1243 = vmatprep.subr.mxu0 0.0
    %1244 = vmatpush2.msra.mxu0 0.0
    %1245 = vmatprep.subr.mxu0 0.0
    %1246 = vmatpush2.msra.mxu0 0.0
    %1247 = vmatprep.mubr.f32.mxu0 0.0
    %1248 = vmatmul.mubr.f32.gmra.mxu0 %v1181
    %v1249 = vpop.f32.mrf.mxu0
    %v1250 = vadd.f32 0.0, %v1249
    %v1251 = vpop.f32.mrf.mxu0
    %1252 = vdwg.mxu0
    %v1254 = vsel %vm767, %v877, 0
    %1256 = vmatprep.subr.mxu0 0.0
    %1257 = vmatpush1.msra.mxu0 0.0
    %1258 = vmatprep.subr.mxu0 0.0
    %1259 = vmatpush1.msra.mxu0 0.0
    %1260 = vmatprep.subr.mxu0 0.0
    %1261 = vmatpush1.msra.mxu0 0.0
    %1262 = vmatprep.subr.mxu0 0.0
    %1263 = vmatpush1.msra.mxu0 0.0
    %1264 = vmatprep.subr.mxu0 0.0
    %1265 = vmatpush1.msra.mxu0 0.0
    %1266 = vmatprep.subr.mxu0 0.0
    %1267 = vmatpush1.msra.mxu0 0.0
    %1268 = vmatprep.subr.mxu0 0.0
    %1269 = vmatpush1.msra.mxu0 0.0
    %1270 = vmatprep.subr.mxu0 0.0
    %1271 = vmatpush1.msra.mxu0 0.0
    %1272 = vmatprep.subr.mxu0 0.0
    %1273 = vmatpush1.msra.mxu0 0.0
    %1274 = vmatprep.subr.mxu0 0.0
    %1275 = vmatpush1.msra.mxu0 0.0
    %1276 = vmatprep.subr.mxu0 0.0
    %1277 = vmatpush1.msra.mxu0 0.0
    %1278 = vmatprep.subr.mxu0 0.0
    %1279 = vmatpush1.msra.mxu0 0.0
    %1280 = vmatprep.subr.mxu0 0.0
    %1281 = vmatpush1.msra.mxu0 0.0
    %1282 = vmatprep.subr.mxu0 0.0
    %1283 = vmatpush1.msra.mxu0 0.0
    %1284 = vmatprep.subr.mxu0 0.0
    %1285 = vmatpush1.msra.mxu0 0.0
    %1286 = vmatprep.subr.mxu0 0.0
    %1287 = vmatpush1.msra.mxu0 %v99
    %1288 = vmatprep.subr.mxu0 0.0
    %1289 = vmatpush2.msra.mxu0 0.0
    %1290 = vmatprep.subr.mxu0 0.0
    %1291 = vmatpush2.msra.mxu0 0.0
    %1292 = vmatprep.subr.mxu0 0.0
    %1293 = vmatpush2.msra.mxu0 0.0
    %1294 = vmatprep.subr.mxu0 0.0
    %1295 = vmatpush2.msra.mxu0 0.0
    %1296 = vmatprep.subr.mxu0 0.0
    %1297 = vmatpush2.msra.mxu0 0.0
    %1298 = vmatprep.subr.mxu0 0.0
    %1299 = vmatpush2.msra.mxu0 0.0
    %1300 = vmatprep.subr.mxu0 0.0
    %1301 = vmatpush2.msra.mxu0 0.0
    %1302 = vmatprep.subr.mxu0 0.0
    %1303 = vmatpush2.msra.mxu0 0.0
    %1304 = vmatprep.subr.mxu0 0.0
    %1305 = vmatpush2.msra.mxu0 0.0
    %1306 = vmatprep.subr.mxu0 0.0
    %1307 = vmatpush2.msra.mxu0 0.0
    %1308 = vmatprep.subr.mxu0 0.0
    %1309 = vmatpush2.msra.mxu0 0.0
    %1310 = vmatprep.subr.mxu0 0.0
    %1311 = vmatpush2.msra.mxu0 0.0
    %1312 = vmatprep.subr.mxu0 0.0
    %1313 = vmatpush2.msra.mxu0 0.0
    %1314 = vmatprep.subr.mxu0 0.0
    %1315 = vmatpush2.msra.mxu0 0.0
    %1316 = vmatprep.subr.mxu0 0.0
    %1317 = vmatpush2.msra.mxu0 0.0
    %1318 = vmatprep.subr.mxu0 0.0
    %1319 = vmatpush2.msra.mxu0 0.0
    %1320 = vmatprep.mubr.f32.mxu0 0.0
    %1321 = vmatmul.mubr.f32.gmra.mxu0 %v1254
    %v1322 = vpop.f32.mrf.mxu0
    %v1323 = vadd.f32 0.0, %v1322
    %v1324 = vpop.f32.mrf.mxu0
    %1325 = vdwg.mxu0
    %v1327 = vsel %vm767, %v878, 0
    %1329 = vmatprep.subr.mxu0 0.0
    %1330 = vmatpush1.msra.mxu0 0.0
    %1331 = vmatprep.subr.mxu0 0.0
    %1332 = vmatpush1.msra.mxu0 0.0
    %1333 = vmatprep.subr.mxu0 0.0
    %1334 = vmatpush1.msra.mxu0 0.0
    %1335 = vmatprep.subr.mxu0 0.0
    %1336 = vmatpush1.msra.mxu0 0.0
    %1337 = vmatprep.subr.mxu0 0.0
    %1338 = vmatpush1.msra.mxu0 0.0
    %1339 = vmatprep.subr.mxu0 0.0
    %1340 = vmatpush1.msra.mxu0 0.0
    %1341 = vmatprep.subr.mxu0 0.0
    %1342 = vmatpush1.msra.mxu0 0.0
    %1343 = vmatprep.subr.mxu0 0.0
    %1344 = vmatpush1.msra.mxu0 0.0
    %1345 = vmatprep.subr.mxu0 0.0
    %1346 = vmatpush1.msra.mxu0 0.0
    %1347 = vmatprep.subr.mxu0 0.0
    %1348 = vmatpush1.msra.mxu0 0.0
    %1349 = vmatprep.subr.mxu0 0.0
    %1350 = vmatpush1.msra.mxu0 0.0
    %1351 = vmatprep.subr.mxu0 0.0
    %1352 = vmatpush1.msra.mxu0 0.0
    %1353 = vmatprep.subr.mxu0 0.0
    %1354 = vmatpush1.msra.mxu0 0.0
    %1355 = vmatprep.subr.mxu0 0.0
    %1356 = vmatpush1.msra.mxu0 0.0
    %1357 = vmatprep.subr.mxu0 0.0
    %1358 = vmatpush1.msra.mxu0 0.0
    %1359 = vmatprep.subr.mxu0 0.0
    %1360 = vmatpush1.msra.mxu0 %v100
    %1361 = vmatprep.subr.mxu0 0.0
    %1362 = vmatpush2.msra.mxu0 0.0
    %1363 = vmatprep.subr.mxu0 0.0
    %1364 = vmatpush2.msra.mxu0 0.0
    %1365 = vmatprep.subr.mxu0 0.0
    %1366 = vmatpush2.msra.mxu0 0.0
    %1367 = vmatprep.subr.mxu0 0.0
    %1368 = vmatpush2.msra.mxu0 0.0
    %1369 = vmatprep.subr.mxu0 0.0
    %1370 = vmatpush2.msra.mxu0 0.0
    %1371 = vmatprep.subr.mxu0 0.0
    %1372 = vmatpush2.msra.mxu0 0.0
    %1373 = vmatprep.subr.mxu0 0.0
    %1374 = vmatpush2.msra.mxu0 0.0
    %1375 = vmatprep.subr.mxu0 0.0
    %1376 = vmatpush2.msra.mxu0 0.0
    %1377 = vmatprep.subr.mxu0 0.0
    %1378 = vmatpush2.msra.mxu0 0.0
    %1379 = vmatprep.subr.mxu0 0.0
    %1380 = vmatpush2.msra.mxu0 0.0
    %1381 = vmatprep.subr.mxu0 0.0
    %1382 = vmatpush2.msra.mxu0 0.0
    %1383 = vmatprep.subr.mxu0 0.0
    %1384 = vmatpush2.msra.mxu0 0.0
    %1385 = vmatprep.subr.mxu0 0.0
    %1386 = vmatpush2.msra.mxu0 0.0
    %1387 = vmatprep.subr.mxu0 0.0
    %1388 = vmatpush2.msra.mxu0 0.0
    %1389 = vmatprep.subr.mxu0 0.0
    %1390 = vmatpush2.msra.mxu0 0.0
    %1391 = vmatprep.subr.mxu0 0.0
    %1392 = vmatpush2.msra.mxu0 0.0
    %1393 = vmatprep.mubr.f32.mxu0 0.0
    %1394 = vmatmul.mubr.f32.gmra.mxu0 %v1327
    %v1395 = vpop.f32.mrf.mxu0
    %v1396 = vadd.f32 0.0, %v1395
    %v1397 = vpop.f32.mrf.mxu0
    %1398 = vdwg.mxu0
    %v1400 = vsel %vm767, %v879, 0
    %1402 = vmatprep.subr.mxu0 0.0
    %1403 = vmatpush1.msra.mxu0 0.0
    %1404 = vmatprep.subr.mxu0 0.0
    %1405 = vmatpush1.msra.mxu0 0.0
    %1406 = vmatprep.subr.mxu0 0.0
    %1407 = vmatpush1.msra.mxu0 0.0
    %1408 = vmatprep.subr.mxu0 0.0
    %1409 = vmatpush1.msra.mxu0 0.0
    %1410 = vmatprep.subr.mxu0 0.0
    %1411 = vmatpush1.msra.mxu0 0.0
    %1412 = vmatprep.subr.mxu0 0.0
    %1413 = vmatpush1.msra.mxu0 0.0
    %1414 = vmatprep.subr.mxu0 0.0
    %1415 = vmatpush1.msra.mxu0 0.0
    %1416 = vmatprep.subr.mxu0 0.0
    %1417 = vmatpush1.msra.mxu0 0.0
    %1418 = vmatprep.subr.mxu0 0.0
    %1419 = vmatpush1.msra.mxu0 0.0
    %1420 = vmatprep.subr.mxu0 0.0
    %1421 = vmatpush1.msra.mxu0 0.0
    %1422 = vmatprep.subr.mxu0 0.0
    %1423 = vmatpush1.msra.mxu0 0.0
    %1424 = vmatprep.subr.mxu0 0.0
    %1425 = vmatpush1.msra.mxu0 0.0
    %1426 = vmatprep.subr.mxu0 0.0
    %1427 = vmatpush1.msra.mxu0 0.0
    %1428 = vmatprep.subr.mxu0 0.0
    %1429 = vmatpush1.msra.mxu0 0.0
    %1430 = vmatprep.subr.mxu0 0.0
    %1431 = vmatpush1.msra.mxu0 0.0
    %1432 = vmatprep.subr.mxu0 0.0
    %1433 = vmatpush1.msra.mxu0 %v101
    %1434 = vmatprep.subr.mxu0 0.0
    %1435 = vmatpush2.msra.mxu0 0.0
    %1436 = vmatprep.subr.mxu0 0.0
    %1437 = vmatpush2.msra.mxu0 0.0
    %1438 = vmatprep.subr.mxu0 0.0
    %1439 = vmatpush2.msra.mxu0 0.0
    %1440 = vmatprep.subr.mxu0 0.0
    %1441 = vmatpush2.msra.mxu0 0.0
    %1442 = vmatprep.subr.mxu0 0.0
    %1443 = vmatpush2.msra.mxu0 0.0
    %1444 = vmatprep.subr.mxu0 0.0
    %1445 = vmatpush2.msra.mxu0 0.0
    %1446 = vmatprep.subr.mxu0 0.0
    %1447 = vmatpush2.msra.mxu0 0.0
    %1448 = vmatprep.subr.mxu0 0.0
    %1449 = vmatpush2.msra.mxu0 0.0
    %1450 = vmatprep.subr.mxu0 0.0
    %1451 = vmatpush2.msra.mxu0 0.0
    %1452 = vmatprep.subr.mxu0 0.0
    %1453 = vmatpush2.msra.mxu0 0.0
    %1454 = vmatprep.subr.mxu0 0.0
    %1455 = vmatpush2.msra.mxu0 0.0
    %1456 = vmatprep.subr.mxu0 0.0
    %1457 = vmatpush2.msra.mxu0 0.0
    %1458 = vmatprep.subr.mxu0 0.0
    %1459 = vmatpush2.msra.mxu0 0.0
    %1460 = vmatprep.subr.mxu0 0.0
    %1461 = vmatpush2.msra.mxu0 0.0
    %1462 = vmatprep.subr.mxu0 0.0
    %1463 = vmatpush2.msra.mxu0 0.0
    %1464 = vmatprep.subr.mxu0 0.0
    %1465 = vmatpush2.msra.mxu0 0.0
    %1466 = vmatprep.mubr.f32.mxu0 0.0
    %1467 = vmatmul.mubr.f32.gmra.mxu0 %v1400
    %v1468 = vpop.f32.mrf.mxu0
    %v1469 = vadd.f32 0.0, %v1468
    %v1470 = vpop.f32.mrf.mxu0
    %1471 = vdwg.mxu0
    %1473 = vrot.lane.b32.xlu0 %v1031, 32
    %v1474 = vpop.permute.xlu0 %1473
    %1477 = vrot.lane.b32.xlu0 %v1104, 64
    %v1478 = vpop.permute.xlu0 %1477
    %1481 = vrot.lane.b32.xlu0 %v1177, 96
    %v1482 = vpop.permute.xlu0 %1481
    %1485 = vrot.lane.b32.xlu0 %v1323, 32
    %v1486 = vpop.permute.xlu0 %1485
    %1489 = vrot.lane.b32.xlu0 %v1396, 64
    %v1490 = vpop.permute.xlu0 %1489
    %1493 = vrot.lane.b32.xlu0 %v1469, 96
    %v1494 = vpop.permute.xlu0 %1493
    %v1496 = vsel %vm110, %v958, %v1474
    %vm1497 = vcmask 523264
    %v1498 = vsel %vm1497, %v1496, %v1478
    %vm1499 = vcmask 785408
    %v1500 = vsel %vm1499, %v1498, %v1482
    %v1501 = vsel %vm110, %v1250, %v1486
    %v1502 = vsel %vm1497, %v1501, %v1490
    %v1503 = vsel %vm1499, %v1502, %v1494
    %1504 = vst [vmem:[#allocation10] sm:$0xff] %v1500
    %1505 = vst [vmem:[#allocation10 + $0x8] sm:$0xff] %v1503
    // Predicated region
    $region34: #{tpu_custom_call.1} parent=1 // pred_check
      _
    $region35: #{tpu_custom_call.1} parent=1 // pred_check_branch
      %1507 = sbr.rel (0) target = $region37
    $region36: #{tpu_custom_call.1} parent=1 // pred_region
      %s1509 = ssub.s32 256, 256
      %1510 = vsyncadd [#allocation4], %s1509
      %s1512 = sshll.u32 [#allocation10], 4
      %s1513 = int_to_ptr.vmem [resolvable:$true] %s1512
      %1515 = dma.vmem_to_hbm [thread:$0]  %s1513, 256, %s4, [#allocation4]
    $region37: #{tpu_custom_call.1} parent=1 // pred_fallthru
      _
    // Predicated region
    $region38: #{tpu_custom_call.1} parent=1 // pred_check
      _
    $region39: #{tpu_custom_call.1} parent=1 // pred_check_branch
      %1517 = sbr.rel (0) target = $region41
    $region40: #{tpu_custom_call.1} parent=1 // pred_region
      %s1519 = ssub.s32 1024, 1024
      %1520 = vsyncadd [#allocation12], %s1519
      %s1521 = sshll.u32 [#allocation11], 4
      %s1522 = int_to_ptr.vmem [resolvable:$true] %s1521
      %1527 = dma.vmem_to_hbm [thread:$0]  %s1522, 1024, %s5, [#allocation12], 128, 128, 8
    $region41: #{tpu_custom_call.1} parent=1 // pred_fallthru
      _
    // Predicated region
    $region42: #{tpu_custom_call.1} parent=1 // pred_check
      _
    $region43: #{tpu_custom_call.1} parent=1 // pred_check_branch
      %1529 = sbr.rel (0) target = $region45
    $region44: #{tpu_custom_call.1} parent=1 // pred_region
      %1530 = dma.done [#allocation4], 256
    $region45: #{tpu_custom_call.1} parent=1 // pred_fallthru
      _
    // Predicated region
    $region46: #{tpu_custom_call.1} parent=1 // pred_check
      _
    $region47: #{tpu_custom_call.1} parent=1 // pred_check_branch
      %1532 = sbr.rel (0) target = $region49
    $region48: #{tpu_custom_call.1} parent=1 // pred_region
      %1533 = dma.done [#allocation12], 1024
    $region49: #{tpu_custom_call.1} parent=1 // pred_fallthru
      _
    %1534 = vsyncpa [#allocation3], 1
    %1535 = vsyncpa [#allocation6], 1
    %1536 = vsyncpa [#allocation9], 1
    %1537 = vsyncpa [#allocation4], 1
    %1538 = vsyncpa [#allocation12], 1

</llo_original>
